<compile_context>
chip_gen: v7x
topology: tpu7x:2x2x1
jax: 0.10.0
libtpu: 0.0.40
codegen_flags: <defaults>
</compile_context>

<pallas_src>
import functools

import jax
import jax.numpy as jnp
from jax import lax
from jax.experimental import pallas as pl
from jax.experimental.pallas import tpu as pltpu


def _residual_block_kernel(x_ref, m_ref, w_ref, b_ref, o_ref, *, W, BHW):
    # x_ref/o_ref: (Cp, B*HW)   m_ref: (8, B*HW)
    # w_ref: (4, Cp, 9*Cp)      b_ref: (4, Cp, 1)
    x0 = x_ref[...].astype(jnp.float32)

    def conv3x3(x, k):
        # x: (Cp, B*HW) f32.  One fused contraction with K = 9*Cp.
        w = w_ref[k]                                   # (Cp, 9*Cp), static slice
        b = b_ref[k]                                   # (Cp, 1)
        taps = []
        t = 0
        for dh in (-1, 0, 1):
            for dw in (-1, 0, 1):
                off = dh * W + dw                      # flat offset of tap (dh, dw)
                if off == 0:
                    taps.append(x)
                else:
                    # shifted[p] = x[(p + off) % BHW]; any entry that wrapped
                    # across an image/row boundary is zeroed by the
                    # host-precomputed border mask (== zero "same" padding).
                    shifted = pltpu.roll(x, (-off) % BHW, axis=1)
                    taps.append(shifted * m_ref[t:t + 1, :])
                    t += 1
        patch = jnp.concatenate(taps, axis=0)          # (9*Cp, B*HW)
        out = jnp.dot(w, patch,
                      preferred_element_type=jnp.float32)   # (Cp, B*HW)
        return out + b                                 # lane-broadcast bias

    def silu(v):
        return v * jax.nn.sigmoid(v)

    # convs[0]: Conv -> SiLU -> Conv, then residual add
    y1 = conv3x3(silu(conv3x3(x0, 0)), 1) + x0
    # convs[1]: SiLU, then residual add
    y2 = silu(y1) + y1
    # convs[2]: Conv -> SiLU -> Conv, then residual add
    y3 = conv3x3(silu(conv3x3(y2, 2)), 3) + y2

    o_ref[...] = y3.astype(o_ref.dtype)                # lane-dense store


def residual_block_pallas(x_nchw, params):
    """x_nchw: (B, C, H, W) float32; params: 4 tuples of (HWIO weight, bias)."""
    B, C, H, W = x_nchw.shape
    HW = H * W
    BHW = B * HW
    Cp = max(8, ((C + 7) // 8) * 8)                    # pad channels to a sublane tile

    def prep_w(w):
        # (3, 3, Cin, Cout) HWIO -> (Cp, 9*Cp); K ordered taps-major (row-major
        # over kh, kw), channel-minor — matches the in-kernel patch layout.
        wp = jnp.zeros((3, 3, Cp, Cp), jnp.float32).at[:, :, :C, :C].set(w)
        return jnp.transpose(wp, (3, 0, 1, 2)).reshape(Cp, 9 * Cp)

    def prep_b(b):
        return jnp.zeros((Cp, 1), jnp.float32).at[:C, 0].set(b)

    (w1a, b1a), (w1b, b1b), (w2a, b2a), (w2b, b2b) = params
    w_all = jnp.stack([prep_w(w) for w in (w1a, w1b, w2a, w2b)], axis=0)  # (4, Cp, 9Cp)
    b_all = jnp.stack([prep_b(b) for b in (b1a, b1b, b2a, b2b)], axis=0)  # (4, Cp, 1)

    # Host-precomputed border-validity masks for the 8 non-center taps.
    # pos runs over the folded (B*HW) lane axis; row/col are per-image.
    pos = jnp.arange(BHW, dtype=jnp.int32)
    row = (pos % HW) // W
    col = pos % W
    mrows = []
    for dh in (-1, 0, 1):
        for dw in (-1, 0, 1):
            if dh == 0 and dw == 0:
                continue
            ok = ((row + dh >= 0) & (row + dh < H) &
                  (col + dw >= 0) & (col + dw < W))
            mrows.append(ok.astype(jnp.float32))
    masks = jnp.stack(mrows, axis=0)                   # (8, B*HW)

    # NCHW -> (Cp, B*HW): channels on sublanes, batch folded into the flat
    # spatial lane axis (image b occupies lanes [b*HW, (b+1)*HW)).
    x_flat = jnp.pad(x_nchw.reshape(B, C, HW), ((0, 0), (0, Cp - C), (0, 0)))
    x_flat = jnp.transpose(x_flat, (1, 0, 2)).reshape(Cp, BHW)

    vmem = pl.BlockSpec(memory_space=pltpu.MemorySpace.VMEM)
    out = pl.pallas_call(
        functools.partial(_residual_block_kernel, W=W, BHW=BHW),
        out_shape=jax.ShapeDtypeStruct((Cp, BHW), jnp.float32),
        in_specs=[vmem, vmem, vmem, vmem],
        out_specs=vmem,
    )(x_flat, masks, w_all, b_all)

    out = out.reshape(Cp, B, HW).transpose(1, 0, 2)[:, :C, :]
    return out.reshape(B, C, H, W)


# ----------------------- pure-JAX reference (for checking) -----------------------
def _conv_ref(x, w, b):
    y = lax.conv_general_dilated(
        x, w, (1, 1), "SAME",
        dimension_numbers=("NHWC", "HWIO", "NHWC"))
    return y + b[None, None, None, :]


def residual_block_ref(x, params):
    (w1a, b1a), (w1b, b1b), (w2a, b2a), (w2b, b2b) = params
    y1 = _conv_ref(jax.nn.silu(_conv_ref(x, w1a, b1a)), w1b, b1b) + x
    y2 = jax.nn.silu(y1) + y1
    y3 = _conv_ref(jax.nn.silu(_conv_ref(y2, w2a, b2a)), w2b, b2b) + y2
    return y3


if __name__ == "__main__":
    B, C, H, W = 2, 4, 16, 16  # PyTorch-style NCHW input shape (2, 4, 16, 16)

    key = jax.random.PRNGKey(0)
    keys = jax.random.split(key, 9)

    # Deterministic synthetic parameters. PyTorch Conv2d weights are OIHW;
    # we generate them directly in HWIO (3, 3, Cin, Cout).
    scale = 1.0 / jnp.sqrt(jnp.float32(C * 3 * 3))

    def make_conv(kw, kb):
        w = jax.random.normal(kw, (3, 3, C, C), jnp.float32) * scale
        b = jax.random.normal(kb, (C,), jnp.float32) * 0.1
        return w, b

    params = (
        make_conv(keys[0], keys[1]),   # convs[0] first Conv
        make_conv(keys[2], keys[3]),   # convs[0] second Conv
        make_conv(keys[4], keys[5]),   # convs[2] first Conv
        make_conv(keys[6], keys[7]),   # convs[2] second Conv
    )

    x_nchw = jax.random.normal(keys[8], (B, C, H, W), jnp.float32)

    out_nchw = jax.block_until_ready(residual_block_pallas(x_nchw, params))

    # Reference path runs in NHWC; transpose back to NCHW for comparison
    # (B=2 with distinct images also exercises the batch-folded lane layout).
    x_nhwc = jnp.transpose(x_nchw, (0, 2, 3, 1))
    ref_nchw = jnp.transpose(residual_block_ref(x_nhwc, params), (0, 3, 1, 2))

    assert out_nchw.shape == (B, C, H, W)
    max_err = float(jnp.max(jnp.abs(out_nchw - ref_nchw)))
    assert jnp.allclose(out_nchw, ref_nchw, atol=1e-4, rtol=1e-4), max_err
    print("KERNEL_OK")
</pallas_src>

<mosaic_0001>
module attributes {stable_mosaic.version = 11 : i64} {
  func.func @_residual_block_kernel(%arg0: memref<8x512xf32, #tpu.memory_space<vmem>>, %arg1: memref<8x512xf32, #tpu.memory_space<vmem>>, %arg2: memref<4x8x72xf32, #tpu.memory_space<vmem>>, %arg3: memref<4x8x1xf32, #tpu.memory_space<vmem>>, %arg4: memref<8x512xf32, #tpu.memory_space<vmem>>) attributes {dimension_semantics = [], scalar_prefetch = 0 : i64, scratch_operands = 0 : i64, tpu.core_type = #tpu.core_type<tc>} {
    %c0 = arith.constant 0 : index
    %c0_0 = arith.constant 0 : index
    %0 = vector.load %arg0[%c0, %c0_0] : memref<8x512xf32, #tpu.memory_space<vmem>>, vector<8x512xf32>
    %c0_1 = arith.constant 0 : index
    %c0_2 = arith.constant 0 : index
    %c0_3 = arith.constant 0 : index
    %1 = vector.load %arg2[%c0_1, %c0_2, %c0_3] : memref<4x8x72xf32, #tpu.memory_space<vmem>>, vector<1x8x72xf32>
    %2 = vector.shape_cast %1 : vector<1x8x72xf32> to vector<8x72xf32>
    %c0_4 = arith.constant 0 : index
    %c0_5 = arith.constant 0 : index
    %c0_6 = arith.constant 0 : index
    %3 = vector.load %arg3[%c0_4, %c0_5, %c0_6] : memref<4x8x1xf32, #tpu.memory_space<vmem>>, vector<1x8x1xf32>
    %4 = vector.shape_cast %3 : vector<1x8x1xf32> to vector<8x1xf32>
    %c17_i32 = arith.constant 17 : i32
    %5 = tpu.dynamic_rotate %0 by %c17_i32 dim 1 : vector<8x512xf32>, i32 -> vector<8x512xf32>
    %c0_7 = arith.constant 0 : index
    %c0_8 = arith.constant 0 : index
    %6 = vector.load %arg1[%c0_7, %c0_8] : memref<8x512xf32, #tpu.memory_space<vmem>>, vector<1x512xf32>
    %7 = vector.broadcast %6 : vector<1x512xf32> to vector<8x512xf32>
    %8 = arith.mulf %5, %7 : vector<8x512xf32>
    %c16_i32 = arith.constant 16 : i32
    %9 = tpu.dynamic_rotate %0 by %c16_i32 dim 1 : vector<8x512xf32>, i32 -> vector<8x512xf32>
    %c1 = arith.constant 1 : index
    %c0_9 = arith.constant 0 : index
    %10 = vector.load %arg1[%c1, %c0_9] : memref<8x512xf32, #tpu.memory_space<vmem>>, vector<1x512xf32>
    %11 = vector.broadcast %10 : vector<1x512xf32> to vector<8x512xf32>
    %12 = arith.mulf %9, %11 : vector<8x512xf32>
    %c15_i32 = arith.constant 15 : i32
    %13 = tpu.dynamic_rotate %0 by %c15_i32 dim 1 : vector<8x512xf32>, i32 -> vector<8x512xf32>
    %c2 = arith.constant 2 : index
    %c0_10 = arith.constant 0 : index
    %14 = vector.load %arg1[%c2, %c0_10] : memref<8x512xf32, #tpu.memory_space<vmem>>, vector<1x512xf32>
    %15 = vector.broadcast %14 : vector<1x512xf32> to vector<8x512xf32>
    %16 = arith.mulf %13, %15 : vector<8x512xf32>
    %c1_i32 = arith.constant 1 : i32
    %17 = tpu.dynamic_rotate %0 by %c1_i32 dim 1 : vector<8x512xf32>, i32 -> vector<8x512xf32>
    %c3 = arith.constant 3 : index
    %c0_11 = arith.constant 0 : index
    %18 = vector.load %arg1[%c3, %c0_11] : memref<8x512xf32, #tpu.memory_space<vmem>>, vector<1x512xf32>
    %19 = vector.broadcast %18 : vector<1x512xf32> to vector<8x512xf32>
    %20 = arith.mulf %17, %19 : vector<8x512xf32>
    %c511_i32 = arith.constant 511 : i32
    %21 = tpu.dynamic_rotate %0 by %c511_i32 dim 1 : vector<8x512xf32>, i32 -> vector<8x512xf32>
    %c4 = arith.constant 4 : index
    %c0_12 = arith.constant 0 : index
    %22 = vector.load %arg1[%c4, %c0_12] : memref<8x512xf32, #tpu.memory_space<vmem>>, vector<1x512xf32>
    %23 = vector.broadcast %22 : vector<1x512xf32> to vector<8x512xf32>
    %24 = arith.mulf %21, %23 : vector<8x512xf32>
    %c497_i32 = arith.constant 497 : i32
    %25 = tpu.dynamic_rotate %0 by %c497_i32 dim 1 : vector<8x512xf32>, i32 -> vector<8x512xf32>
    %c5 = arith.constant 5 : index
    %c0_13 = arith.constant 0 : index
    %26 = vector.load %arg1[%c5, %c0_13] : memref<8x512xf32, #tpu.memory_space<vmem>>, vector<1x512xf32>
    %27 = vector.broadcast %26 : vector<1x512xf32> to vector<8x512xf32>
    %28 = arith.mulf %25, %27 : vector<8x512xf32>
    %c496_i32 = arith.constant 496 : i32
    %29 = tpu.dynamic_rotate %0 by %c496_i32 dim 1 : vector<8x512xf32>, i32 -> vector<8x512xf32>
    %c6 = arith.constant 6 : index
    %c0_14 = arith.constant 0 : index
    %30 = vector.load %arg1[%c6, %c0_14] : memref<8x512xf32, #tpu.memory_space<vmem>>, vector<1x512xf32>
    %31 = vector.broadcast %30 : vector<1x512xf32> to vector<8x512xf32>
    %32 = arith.mulf %29, %31 : vector<8x512xf32>
    %c495_i32 = arith.constant 495 : i32
    %33 = tpu.dynamic_rotate %0 by %c495_i32 dim 1 : vector<8x512xf32>, i32 -> vector<8x512xf32>
    %c7 = arith.constant 7 : index
    %c0_15 = arith.constant 0 : index
    %34 = vector.load %arg1[%c7, %c0_15] : memref<8x512xf32, #tpu.memory_space<vmem>>, vector<1x512xf32>
    %35 = vector.broadcast %34 : vector<1x512xf32> to vector<8x512xf32>
    %36 = arith.mulf %33, %35 : vector<8x512xf32>
    %37 = tpu.concatenate %8, %12, %16, %20, %0, %24, %28, %32, %36 in 0 : vector<8x512xf32>, vector<8x512xf32>, vector<8x512xf32>, vector<8x512xf32>, vector<8x512xf32>, vector<8x512xf32>, vector<8x512xf32>, vector<8x512xf32>, vector<8x512xf32> -> vector<72x512xf32>
    %cst = arith.constant dense<0.000000e+00> : vector<8x512xf32>
    %38 = tpu.matmul %2, %37, %cst {dimension_numbers = #tpu.dot_dimension_numbers<[1], [0], [0], [1], [0, 0, 1, 1], [], []>} : vector<8x72xf32>, vector<72x512xf32>, vector<8x512xf32> -> vector<8x512xf32>
    %39 = vector.broadcast %4 : vector<8x1xf32> to vector<8x512xf32>
    %40 = arith.addf %38, %39 : vector<8x512xf32>
    %41 = arith.negf %40 : vector<8x512xf32>
    %42 = math.exp %41 : vector<8x512xf32>
    %cst_16 = arith.constant 1.000000e+00 : f32
    %43 = vector.broadcast %cst_16 : f32 to vector<8x512xf32>
    %44 = arith.addf %43, %42 : vector<8x512xf32>
    %45 = arith.divf %43, %44 : vector<8x512xf32>
    %46 = arith.mulf %40, %45 : vector<8x512xf32>
    %c1_17 = arith.constant 1 : index
    %c0_18 = arith.constant 0 : index
    %c0_19 = arith.constant 0 : index
    %47 = vector.load %arg2[%c1_17, %c0_18, %c0_19] : memref<4x8x72xf32, #tpu.memory_space<vmem>>, vector<1x8x72xf32>
    %48 = vector.shape_cast %47 : vector<1x8x72xf32> to vector<8x72xf32>
    %c1_20 = arith.constant 1 : index
    %c0_21 = arith.constant 0 : index
    %c0_22 = arith.constant 0 : index
    %49 = vector.load %arg3[%c1_20, %c0_21, %c0_22] : memref<4x8x1xf32, #tpu.memory_space<vmem>>, vector<1x8x1xf32>
    %50 = vector.shape_cast %49 : vector<1x8x1xf32> to vector<8x1xf32>
    %c17_i32_23 = arith.constant 17 : i32
    %51 = tpu.dynamic_rotate %46 by %c17_i32_23 dim 1 : vector<8x512xf32>, i32 -> vector<8x512xf32>
    %c0_24 = arith.constant 0 : index
    %c0_25 = arith.constant 0 : index
    %52 = vector.load %arg1[%c0_24, %c0_25] : memref<8x512xf32, #tpu.memory_space<vmem>>, vector<1x512xf32>
    %53 = vector.broadcast %52 : vector<1x512xf32> to vector<8x512xf32>
    %54 = arith.mulf %51, %53 : vector<8x512xf32>
    %c16_i32_26 = arith.constant 16 : i32
    %55 = tpu.dynamic_rotate %46 by %c16_i32_26 dim 1 : vector<8x512xf32>, i32 -> vector<8x512xf32>
    %c1_27 = arith.constant 1 : index
    %c0_28 = arith.constant 0 : index
    %56 = vector.load %arg1[%c1_27, %c0_28] : memref<8x512xf32, #tpu.memory_space<vmem>>, vector<1x512xf32>
    %57 = vector.broadcast %56 : vector<1x512xf32> to vector<8x512xf32>
    %58 = arith.mulf %55, %57 : vector<8x512xf32>
    %c15_i32_29 = arith.constant 15 : i32
    %59 = tpu.dynamic_rotate %46 by %c15_i32_29 dim 1 : vector<8x512xf32>, i32 -> vector<8x512xf32>
    %c2_30 = arith.constant 2 : index
    %c0_31 = arith.constant 0 : index
    %60 = vector.load %arg1[%c2_30, %c0_31] : memref<8x512xf32, #tpu.memory_space<vmem>>, vector<1x512xf32>
    %61 = vector.broadcast %60 : vector<1x512xf32> to vector<8x512xf32>
    %62 = arith.mulf %59, %61 : vector<8x512xf32>
    %c1_i32_32 = arith.constant 1 : i32
    %63 = tpu.dynamic_rotate %46 by %c1_i32_32 dim 1 : vector<8x512xf32>, i32 -> vector<8x512xf32>
    %c3_33 = arith.constant 3 : index
    %c0_34 = arith.constant 0 : index
    %64 = vector.load %arg1[%c3_33, %c0_34] : memref<8x512xf32, #tpu.memory_space<vmem>>, vector<1x512xf32>
    %65 = vector.broadcast %64 : vector<1x512xf32> to vector<8x512xf32>
    %66 = arith.mulf %63, %65 : vector<8x512xf32>
    %c511_i32_35 = arith.constant 511 : i32
    %67 = tpu.dynamic_rotate %46 by %c511_i32_35 dim 1 : vector<8x512xf32>, i32 -> vector<8x512xf32>
    %c4_36 = arith.constant 4 : index
    %c0_37 = arith.constant 0 : index
    %68 = vector.load %arg1[%c4_36, %c0_37] : memref<8x512xf32, #tpu.memory_space<vmem>>, vector<1x512xf32>
    %69 = vector.broadcast %68 : vector<1x512xf32> to vector<8x512xf32>
    %70 = arith.mulf %67, %69 : vector<8x512xf32>
    %c497_i32_38 = arith.constant 497 : i32
    %71 = tpu.dynamic_rotate %46 by %c497_i32_38 dim 1 : vector<8x512xf32>, i32 -> vector<8x512xf32>
    %c5_39 = arith.constant 5 : index
    %c0_40 = arith.constant 0 : index
    %72 = vector.load %arg1[%c5_39, %c0_40] : memref<8x512xf32, #tpu.memory_space<vmem>>, vector<1x512xf32>
    %73 = vector.broadcast %72 : vector<1x512xf32> to vector<8x512xf32>
    %74 = arith.mulf %71, %73 : vector<8x512xf32>
    %c496_i32_41 = arith.constant 496 : i32
    %75 = tpu.dynamic_rotate %46 by %c496_i32_41 dim 1 : vector<8x512xf32>, i32 -> vector<8x512xf32>
    %c6_42 = arith.constant 6 : index
    %c0_43 = arith.constant 0 : index
    %76 = vector.load %arg1[%c6_42, %c0_43] : memref<8x512xf32, #tpu.memory_space<vmem>>, vector<1x512xf32>
    %77 = vector.broadcast %76 : vector<1x512xf32> to vector<8x512xf32>
    %78 = arith.mulf %75, %77 : vector<8x512xf32>
    %c495_i32_44 = arith.constant 495 : i32
    %79 = tpu.dynamic_rotate %46 by %c495_i32_44 dim 1 : vector<8x512xf32>, i32 -> vector<8x512xf32>
    %c7_45 = arith.constant 7 : index
    %c0_46 = arith.constant 0 : index
    %80 = vector.load %arg1[%c7_45, %c0_46] : memref<8x512xf32, #tpu.memory_space<vmem>>, vector<1x512xf32>
    %81 = vector.broadcast %80 : vector<1x512xf32> to vector<8x512xf32>
    %82 = arith.mulf %79, %81 : vector<8x512xf32>
    %83 = tpu.concatenate %54, %58, %62, %66, %46, %70, %74, %78, %82 in 0 : vector<8x512xf32>, vector<8x512xf32>, vector<8x512xf32>, vector<8x512xf32>, vector<8x512xf32>, vector<8x512xf32>, vector<8x512xf32>, vector<8x512xf32>, vector<8x512xf32> -> vector<72x512xf32>
    %cst_47 = arith.constant dense<0.000000e+00> : vector<8x512xf32>
    %84 = tpu.matmul %48, %83, %cst_47 {dimension_numbers = #tpu.dot_dimension_numbers<[1], [0], [0], [1], [0, 0, 1, 1], [], []>} : vector<8x72xf32>, vector<72x512xf32>, vector<8x512xf32> -> vector<8x512xf32>
    %85 = vector.broadcast %50 : vector<8x1xf32> to vector<8x512xf32>
    %86 = arith.addf %84, %85 : vector<8x512xf32>
    %87 = arith.addf %86, %0 : vector<8x512xf32>
    %88 = arith.negf %87 : vector<8x512xf32>
    %89 = math.exp %88 : vector<8x512xf32>
    %cst_48 = arith.constant 1.000000e+00 : f32
    %90 = vector.broadcast %cst_48 : f32 to vector<8x512xf32>
    %91 = arith.addf %90, %89 : vector<8x512xf32>
    %92 = arith.divf %90, %91 : vector<8x512xf32>
    %93 = arith.mulf %87, %92 : vector<8x512xf32>
    %94 = arith.addf %93, %87 : vector<8x512xf32>
    %c2_49 = arith.constant 2 : index
    %c0_50 = arith.constant 0 : index
    %c0_51 = arith.constant 0 : index
    %95 = vector.load %arg2[%c2_49, %c0_50, %c0_51] : memref<4x8x72xf32, #tpu.memory_space<vmem>>, vector<1x8x72xf32>
    %96 = vector.shape_cast %95 : vector<1x8x72xf32> to vector<8x72xf32>
    %c2_52 = arith.constant 2 : index
    %c0_53 = arith.constant 0 : index
    %c0_54 = arith.constant 0 : index
    %97 = vector.load %arg3[%c2_52, %c0_53, %c0_54] : memref<4x8x1xf32, #tpu.memory_space<vmem>>, vector<1x8x1xf32>
    %98 = vector.shape_cast %97 : vector<1x8x1xf32> to vector<8x1xf32>
    %c17_i32_55 = arith.constant 17 : i32
    %99 = tpu.dynamic_rotate %94 by %c17_i32_55 dim 1 : vector<8x512xf32>, i32 -> vector<8x512xf32>
    %c0_56 = arith.constant 0 : index
    %c0_57 = arith.constant 0 : index
    %100 = vector.load %arg1[%c0_56, %c0_57] : memref<8x512xf32, #tpu.memory_space<vmem>>, vector<1x512xf32>
    %101 = vector.broadcast %100 : vector<1x512xf32> to vector<8x512xf32>
    %102 = arith.mulf %99, %101 : vector<8x512xf32>
    %c16_i32_58 = arith.constant 16 : i32
    %103 = tpu.dynamic_rotate %94 by %c16_i32_58 dim 1 : vector<8x512xf32>, i32 -> vector<8x512xf32>
    %c1_59 = arith.constant 1 : index
    %c0_60 = arith.constant 0 : index
    %104 = vector.load %arg1[%c1_59, %c0_60] : memref<8x512xf32, #tpu.memory_space<vmem>>, vector<1x512xf32>
    %105 = vector.broadcast %104 : vector<1x512xf32> to vector<8x512xf32>
    %106 = arith.mulf %103, %105 : vector<8x512xf32>
    %c15_i32_61 = arith.constant 15 : i32
    %107 = tpu.dynamic_rotate %94 by %c15_i32_61 dim 1 : vector<8x512xf32>, i32 -> vector<8x512xf32>
    %c2_62 = arith.constant 2 : index
    %c0_63 = arith.constant 0 : index
    %108 = vector.load %arg1[%c2_62, %c0_63] : memref<8x512xf32, #tpu.memory_space<vmem>>, vector<1x512xf32>
    %109 = vector.broadcast %108 : vector<1x512xf32> to vector<8x512xf32>
    %110 = arith.mulf %107, %109 : vector<8x512xf32>
    %c1_i32_64 = arith.constant 1 : i32
    %111 = tpu.dynamic_rotate %94 by %c1_i32_64 dim 1 : vector<8x512xf32>, i32 -> vector<8x512xf32>
    %c3_65 = arith.constant 3 : index
    %c0_66 = arith.constant 0 : index
    %112 = vector.load %arg1[%c3_65, %c0_66] : memref<8x512xf32, #tpu.memory_space<vmem>>, vector<1x512xf32>
    %113 = vector.broadcast %112 : vector<1x512xf32> to vector<8x512xf32>
    %114 = arith.mulf %111, %113 : vector<8x512xf32>
    %c511_i32_67 = arith.constant 511 : i32
    %115 = tpu.dynamic_rotate %94 by %c511_i32_67 dim 1 : vector<8x512xf32>, i32 -> vector<8x512xf32>
    %c4_68 = arith.constant 4 : index
    %c0_69 = arith.constant 0 : index
    %116 = vector.load %arg1[%c4_68, %c0_69] : memref<8x512xf32, #tpu.memory_space<vmem>>, vector<1x512xf32>
    %117 = vector.broadcast %116 : vector<1x512xf32> to vector<8x512xf32>
    %118 = arith.mulf %115, %117 : vector<8x512xf32>
    %c497_i32_70 = arith.constant 497 : i32
    %119 = tpu.dynamic_rotate %94 by %c497_i32_70 dim 1 : vector<8x512xf32>, i32 -> vector<8x512xf32>
    %c5_71 = arith.constant 5 : index
    %c0_72 = arith.constant 0 : index
    %120 = vector.load %arg1[%c5_71, %c0_72] : memref<8x512xf32, #tpu.memory_space<vmem>>, vector<1x512xf32>
    %121 = vector.broadcast %120 : vector<1x512xf32> to vector<8x512xf32>
    %122 = arith.mulf %119, %121 : vector<8x512xf32>
    %c496_i32_73 = arith.constant 496 : i32
    %123 = tpu.dynamic_rotate %94 by %c496_i32_73 dim 1 : vector<8x512xf32>, i32 -> vector<8x512xf32>
    %c6_74 = arith.constant 6 : index
    %c0_75 = arith.constant 0 : index
    %124 = vector.load %arg1[%c6_74, %c0_75] : memref<8x512xf32, #tpu.memory_space<vmem>>, vector<1x512xf32>
    %125 = vector.broadcast %124 : vector<1x512xf32> to vector<8x512xf32>
    %126 = arith.mulf %123, %125 : vector<8x512xf32>
    %c495_i32_76 = arith.constant 495 : i32
    %127 = tpu.dynamic_rotate %94 by %c495_i32_76 dim 1 : vector<8x512xf32>, i32 -> vector<8x512xf32>
    %c7_77 = arith.constant 7 : index
    %c0_78 = arith.constant 0 : index
    %128 = vector.load %arg1[%c7_77, %c0_78] : memref<8x512xf32, #tpu.memory_space<vmem>>, vector<1x512xf32>
    %129 = vector.broadcast %128 : vector<1x512xf32> to vector<8x512xf32>
    %130 = arith.mulf %127, %129 : vector<8x512xf32>
    %131 = tpu.concatenate %102, %106, %110, %114, %94, %118, %122, %126, %130 in 0 : vector<8x512xf32>, vector<8x512xf32>, vector<8x512xf32>, vector<8x512xf32>, vector<8x512xf32>, vector<8x512xf32>, vector<8x512xf32>, vector<8x512xf32>, vector<8x512xf32> -> vector<72x512xf32>
    %cst_79 = arith.constant dense<0.000000e+00> : vector<8x512xf32>
    %132 = tpu.matmul %96, %131, %cst_79 {dimension_numbers = #tpu.dot_dimension_numbers<[1], [0], [0], [1], [0, 0, 1, 1], [], []>} : vector<8x72xf32>, vector<72x512xf32>, vector<8x512xf32> -> vector<8x512xf32>
    %133 = vector.broadcast %98 : vector<8x1xf32> to vector<8x512xf32>
    %134 = arith.addf %132, %133 : vector<8x512xf32>
    %135 = arith.negf %134 : vector<8x512xf32>
    %136 = math.exp %135 : vector<8x512xf32>
    %cst_80 = arith.constant 1.000000e+00 : f32
    %137 = vector.broadcast %cst_80 : f32 to vector<8x512xf32>
    %138 = arith.addf %137, %136 : vector<8x512xf32>
    %139 = arith.divf %137, %138 : vector<8x512xf32>
    %140 = arith.mulf %134, %139 : vector<8x512xf32>
    %c3_81 = arith.constant 3 : index
    %c0_82 = arith.constant 0 : index
    %c0_83 = arith.constant 0 : index
    %141 = vector.load %arg2[%c3_81, %c0_82, %c0_83] : memref<4x8x72xf32, #tpu.memory_space<vmem>>, vector<1x8x72xf32>
    %142 = vector.shape_cast %141 : vector<1x8x72xf32> to vector<8x72xf32>
    %c3_84 = arith.constant 3 : index
    %c0_85 = arith.constant 0 : index
    %c0_86 = arith.constant 0 : index
    %143 = vector.load %arg3[%c3_84, %c0_85, %c0_86] : memref<4x8x1xf32, #tpu.memory_space<vmem>>, vector<1x8x1xf32>
    %144 = vector.shape_cast %143 : vector<1x8x1xf32> to vector<8x1xf32>
    %c17_i32_87 = arith.constant 17 : i32
    %145 = tpu.dynamic_rotate %140 by %c17_i32_87 dim 1 : vector<8x512xf32>, i32 -> vector<8x512xf32>
    %c0_88 = arith.constant 0 : index
    %c0_89 = arith.constant 0 : index
    %146 = vector.load %arg1[%c0_88, %c0_89] : memref<8x512xf32, #tpu.memory_space<vmem>>, vector<1x512xf32>
    %147 = vector.broadcast %146 : vector<1x512xf32> to vector<8x512xf32>
    %148 = arith.mulf %145, %147 : vector<8x512xf32>
    %c16_i32_90 = arith.constant 16 : i32
    %149 = tpu.dynamic_rotate %140 by %c16_i32_90 dim 1 : vector<8x512xf32>, i32 -> vector<8x512xf32>
    %c1_91 = arith.constant 1 : index
    %c0_92 = arith.constant 0 : index
    %150 = vector.load %arg1[%c1_91, %c0_92] : memref<8x512xf32, #tpu.memory_space<vmem>>, vector<1x512xf32>
    %151 = vector.broadcast %150 : vector<1x512xf32> to vector<8x512xf32>
    %152 = arith.mulf %149, %151 : vector<8x512xf32>
    %c15_i32_93 = arith.constant 15 : i32
    %153 = tpu.dynamic_rotate %140 by %c15_i32_93 dim 1 : vector<8x512xf32>, i32 -> vector<8x512xf32>
    %c2_94 = arith.constant 2 : index
    %c0_95 = arith.constant 0 : index
    %154 = vector.load %arg1[%c2_94, %c0_95] : memref<8x512xf32, #tpu.memory_space<vmem>>, vector<1x512xf32>
    %155 = vector.broadcast %154 : vector<1x512xf32> to vector<8x512xf32>
    %156 = arith.mulf %153, %155 : vector<8x512xf32>
    %c1_i32_96 = arith.constant 1 : i32
    %157 = tpu.dynamic_rotate %140 by %c1_i32_96 dim 1 : vector<8x512xf32>, i32 -> vector<8x512xf32>
    %c3_97 = arith.constant 3 : index
    %c0_98 = arith.constant 0 : index
    %158 = vector.load %arg1[%c3_97, %c0_98] : memref<8x512xf32, #tpu.memory_space<vmem>>, vector<1x512xf32>
    %159 = vector.broadcast %158 : vector<1x512xf32> to vector<8x512xf32>
    %160 = arith.mulf %157, %159 : vector<8x512xf32>
    %c511_i32_99 = arith.constant 511 : i32
    %161 = tpu.dynamic_rotate %140 by %c511_i32_99 dim 1 : vector<8x512xf32>, i32 -> vector<8x512xf32>
    %c4_100 = arith.constant 4 : index
    %c0_101 = arith.constant 0 : index
    %162 = vector.load %arg1[%c4_100, %c0_101] : memref<8x512xf32, #tpu.memory_space<vmem>>, vector<1x512xf32>
    %163 = vector.broadcast %162 : vector<1x512xf32> to vector<8x512xf32>
    %164 = arith.mulf %161, %163 : vector<8x512xf32>
    %c497_i32_102 = arith.constant 497 : i32
    %165 = tpu.dynamic_rotate %140 by %c497_i32_102 dim 1 : vector<8x512xf32>, i32 -> vector<8x512xf32>
    %c5_103 = arith.constant 5 : index
    %c0_104 = arith.constant 0 : index
    %166 = vector.load %arg1[%c5_103, %c0_104] : memref<8x512xf32, #tpu.memory_space<vmem>>, vector<1x512xf32>
    %167 = vector.broadcast %166 : vector<1x512xf32> to vector<8x512xf32>
    %168 = arith.mulf %165, %167 : vector<8x512xf32>
    %c496_i32_105 = arith.constant 496 : i32
    %169 = tpu.dynamic_rotate %140 by %c496_i32_105 dim 1 : vector<8x512xf32>, i32 -> vector<8x512xf32>
    %c6_106 = arith.constant 6 : index
    %c0_107 = arith.constant 0 : index
    %170 = vector.load %arg1[%c6_106, %c0_107] : memref<8x512xf32, #tpu.memory_space<vmem>>, vector<1x512xf32>
    %171 = vector.broadcast %170 : vector<1x512xf32> to vector<8x512xf32>
    %172 = arith.mulf %169, %171 : vector<8x512xf32>
    %c495_i32_108 = arith.constant 495 : i32
    %173 = tpu.dynamic_rotate %140 by %c495_i32_108 dim 1 : vector<8x512xf32>, i32 -> vector<8x512xf32>
    %c7_109 = arith.constant 7 : index
    %c0_110 = arith.constant 0 : index
    %174 = vector.load %arg1[%c7_109, %c0_110] : memref<8x512xf32, #tpu.memory_space<vmem>>, vector<1x512xf32>
    %175 = vector.broadcast %174 : vector<1x512xf32> to vector<8x512xf32>
    %176 = arith.mulf %173, %175 : vector<8x512xf32>
    %177 = tpu.concatenate %148, %152, %156, %160, %140, %164, %168, %172, %176 in 0 : vector<8x512xf32>, vector<8x512xf32>, vector<8x512xf32>, vector<8x512xf32>, vector<8x512xf32>, vector<8x512xf32>, vector<8x512xf32>, vector<8x512xf32>, vector<8x512xf32> -> vector<72x512xf32>
    %cst_111 = arith.constant dense<0.000000e+00> : vector<8x512xf32>
    %178 = tpu.matmul %142, %177, %cst_111 {dimension_numbers = #tpu.dot_dimension_numbers<[1], [0], [0], [1], [0, 0, 1, 1], [], []>} : vector<8x72xf32>, vector<72x512xf32>, vector<8x512xf32> -> vector<8x512xf32>
    %179 = vector.broadcast %144 : vector<8x1xf32> to vector<8x512xf32>
    %180 = arith.addf %178, %179 : vector<8x512xf32>
    %181 = arith.addf %180, %94 : vector<8x512xf32>
    %c0_112 = arith.constant 0 : index
    %c0_113 = arith.constant 0 : index
    %182 = vector.load %arg4[%c0_112, %c0_113] : memref<8x512xf32, #tpu.memory_space<vmem>>, vector<8x512xf32>
    tpu.vector_store %arg4[%c0_112, %c0_113], %181 {strides = array<i32>} : memref<8x512xf32, #tpu.memory_space<vmem>>, vector<8x512xf32>,
    return
  }
}

</mosaic_0001>

<llo_original>
// kernel: tpu_custom_call.1
$region0: #{tpu_custom_call.1}
  #allocation0 [shape = 'u32[]', space=smem, size = 0x4, offset = 0x4, fixed_abs, tag = 'smem constant byte address 0x4 - core index']
  #allocation1 [shape = 'u32[144,128]{1,0:T(1,128)}', space=vmem, size = 0x12000, scoped, tag = 'internal scratch']
  %s0 = inlined_call_operand.vmem [shape: f32[8,512], index: 0, kind: input, shape index: {}]
  %s1 = inlined_call_operand.hbm [shape: f32[8,512], index: 1, kind: input, shape index: {}]
  %s2 = inlined_call_operand.hbm [shape: f32[4,8,72], index: 2, kind: input, shape index: {}]
  %s3 = inlined_call_operand.vmem [shape: f32[4,8,1], index: 3, kind: input, shape index: {}]
  %s4 = inlined_call_operand.hbm [shape: f32[8,512], index: 4, kind: output, shape index: {}]
  %s5 = sld [smem:[#allocation0]]
  $region34: #{tpu_custom_call.1} parent=0
    _
  %s7 = ssub.s32 1, %s5
  %s8 = scalar_select 0, %s7, %s5
  $region1: #{tpu_custom_call.1} parent=0
    #allocation2 [shape = 'u8[16384]{0}', space=vmem, size = 0x4000, scoped, tag = 'input window, operand 1, single buffered']
    #allocation3 [shape = 's32[1]{0}', space=sflag, size = 0x4, scoped, tag = 'scoped memory for tpu_custom_call.1']
    #allocation4 [shape = 's32[1]{0}', space=sflag, size = 0x4, scoped, tag = 'scoped memory for tpu_custom_call.1']
    #allocation5 [shape = 'u8[16384]{0}', space=vmem, size = 0x4000, scoped, tag = 'input window, operand 2, single buffered']
    #allocation6 [shape = 's32[1]{0}', space=sflag, size = 0x4, scoped, tag = 'scoped memory for tpu_custom_call.1']
    #allocation7 [shape = 'u8[16384]{0}', space=vmem, size = 0x4000, scoped, tag = 'output window, operand 0, single buffered']
    %9 = vsyncpa [#allocation3], 0
    %10 = vsyncpa [#allocation6], 0
    %11 = vsyncpa [#allocation4], 0
    // Predicated region
    $region2: #{tpu_custom_call.1} parent=1 // pred_check
      _
    $region3: #{tpu_custom_call.1} parent=1 // pred_check_branch
      %13 = sbr.rel (0) target = $region5
    $region4: #{tpu_custom_call.1} parent=1 // pred_region
      _
    $region5: #{tpu_custom_call.1} parent=1 // pred_fallthru
      _
    // Predicated region
    $region6: #{tpu_custom_call.1} parent=1 // pred_check
      _
    $region7: #{tpu_custom_call.1} parent=1 // pred_check_branch
      %15 = sbr.rel (0) target = $region9
    $region8: #{tpu_custom_call.1} parent=1 // pred_region
      %s17 = ssub.s32 512, 512
      %18 = vsyncadd [#allocation3], %s17
      %s20 = sshll.u32 [#allocation2], 4
      %s21 = int_to_ptr.vmem [resolvable:$true] %s20
      %23 = dma.hbm_to_vmem [thread:$0]  %s1, 512, %s21, [#allocation3]
    $region9: #{tpu_custom_call.1} parent=1 // pred_fallthru
      _
    // Predicated region
    $region10: #{tpu_custom_call.1} parent=1 // pred_check
      _
    $region11: #{tpu_custom_call.1} parent=1 // pred_check_branch
      %25 = sbr.rel (0) target = $region13
    $region12: #{tpu_custom_call.1} parent=1 // pred_region
      %s27 = ssub.s32 512, 512
      %28 = vsyncadd [#allocation6], %s27
      %s29 = sshll.u32 [#allocation5], 4
      %s30 = int_to_ptr.vmem [resolvable:$true] %s29
      %35 = dma.hbm_to_vmem [thread:$0]  %s2, 512, %s30, [#allocation6], 128, 128, 8
    $region13: #{tpu_custom_call.1} parent=1 // pred_fallthru
      _
    // Predicated region
    $region14: #{tpu_custom_call.1} parent=1 // pred_check
      _
    $region15: #{tpu_custom_call.1} parent=1 // pred_check_branch
      %37 = sbr.rel (0) target = $region17
    $region16: #{tpu_custom_call.1} parent=1 // pred_region
      _
    $region17: #{tpu_custom_call.1} parent=1 // pred_fallthru
      _
    // Predicated region
    $region18: #{tpu_custom_call.1} parent=1 // pred_check
      _
    $region19: #{tpu_custom_call.1} parent=1 // pred_check_branch
      %39 = sbr.rel (0) target = $region21
    $region20: #{tpu_custom_call.1} parent=1 // pred_region
      %40 = dma.done [#allocation3], 512
    $region21: #{tpu_custom_call.1} parent=1 // pred_fallthru
      _
    // Predicated region
    $region22: #{tpu_custom_call.1} parent=1 // pred_check
      _
    $region23: #{tpu_custom_call.1} parent=1 // pred_check_branch
      %42 = sbr.rel (0) target = $region25
    $region24: #{tpu_custom_call.1} parent=1 // pred_region
      %43 = dma.done [#allocation6], 512
    $region25: #{tpu_custom_call.1} parent=1 // pred_fallthru
      _
    %v44 = vld [vmem:[%s0] sm:$0xff]
    %v45 = vld [vmem:[%s0 + $0x8] sm:$0xff]
    %v46 = vld [vmem:[%s0 + $0x10] sm:$0xff]
    %v47 = vld [vmem:[%s0 + $0x18] sm:$0xff]
    %v48 = vld [vmem:[#allocation5] sm:$0xff]
    %v49 = vld [vmem:[%s3] sm:$0xff]
    %50 = vrot.lane.b32.xlu0 %v44, 17
    %v51 = vpop.permute.xlu0 %50
    %52 = vrot.lane.b32.xlu0 %v45, 17
    %v53 = vpop.permute.xlu0 %52
    %54 = vrot.lane.b32.xlu0 %v46, 17
    %v55 = vpop.permute.xlu0 %54
    %56 = vrot.lane.b32.xlu0 %v47, 17
    %v57 = vpop.permute.xlu0 %56
    %v58 = vlaneseq
    %v59 = vand.u32 %v58, 127
    %vm60 = vcmp.lt.s32.totalorder %v59, 17
    %v61 = vsel %vm60, %v55, %v57
    %v62 = vsel %vm60, %v53, %v55
    %v63 = vsel %vm60, %v51, %v53
    %v64 = vsel %vm60, %v57, %v51
    %v65 = vld [vmem:[#allocation2] ss:$8 sm:$0xf]
    %v67 = vlaneseq
    %v68 = vshrl.u32 %v67, 7
    %v69 = vsub.s32 0, %v68
    %v70 = vrot.slane %v65, %v69
    %v71 = vlaneseq
    %v72 = vshrl.u32 %v71, 7
    %v73 = vsub.s32 1, %v72
    %v74 = vrot.slane %v65, %v73
    %v75 = vlaneseq
    %v76 = vshrl.u32 %v75, 7
    %v77 = vsub.s32 2, %v76
    %v78 = vrot.slane %v65, %v77
    %v79 = vlaneseq
    %v80 = vshrl.u32 %v79, 7
    %v81 = vsub.s32 3, %v80
    %v82 = vrot.slane %v65, %v81
    %v87 = vmul.f32 %v64, %v70
    %v88 = vmul.f32 %v63, %v74
    %v89 = vmul.f32 %v62, %v78
    %v90 = vmul.f32 %v61, %v82
    %91 = vrot.lane.b32.xlu0 %v44, 16
    %v92 = vpop.permute.xlu0 %91
    %93 = vrot.lane.b32.xlu0 %v45, 16
    %v94 = vpop.permute.xlu0 %93
    %95 = vrot.lane.b32.xlu0 %v46, 16
    %v96 = vpop.permute.xlu0 %95
    %97 = vrot.lane.b32.xlu0 %v47, 16
    %v98 = vpop.permute.xlu0 %97
    %vm99 = vcmp.lt.s32.totalorder %v59, 16
    %v100 = vsel %vm99, %v96, %v98
    %v101 = vsel %vm99, %v94, %v96
    %v102 = vsel %vm99, %v92, %v94
    %v103 = vsel %vm99, %v98, %v92
    %s104 = scalar_lea.vmem [#allocation2], 1
    %v105 = vld [vmem:[%s104] ss:$8 sm:$0xf]
    %v107 = vlaneseq
    %v108 = vshrl.u32 %v107, 7
    %v109 = vsub.s32 0, %v108
    %v110 = vrot.slane %v105, %v109
    %v111 = vlaneseq
    %v112 = vshrl.u32 %v111, 7
    %v113 = vsub.s32 1, %v112
    %v114 = vrot.slane %v105, %v113
    %v115 = vlaneseq
    %v116 = vshrl.u32 %v115, 7
    %v117 = vsub.s32 2, %v116
    %v118 = vrot.slane %v105, %v117
    %v119 = vlaneseq
    %v120 = vshrl.u32 %v119, 7
    %v121 = vsub.s32 3, %v120
    %v122 = vrot.slane %v105, %v121
    %v127 = vmul.f32 %v103, %v110
    %v128 = vmul.f32 %v102, %v114
    %v129 = vmul.f32 %v101, %v118
    %v130 = vmul.f32 %v100, %v122
    %131 = vrot.lane.b32.xlu0 %v44, 15
    %v132 = vpop.permute.xlu0 %131
    %133 = vrot.lane.b32.xlu0 %v45, 15
    %v134 = vpop.permute.xlu0 %133
    %135 = vrot.lane.b32.xlu0 %v46, 15
    %v136 = vpop.permute.xlu0 %135
    %137 = vrot.lane.b32.xlu0 %v47, 15
    %v138 = vpop.permute.xlu0 %137
    %vm139 = vcmp.lt.s32.totalorder %v59, 15
    %v140 = vsel %vm139, %v136, %v138
    %v141 = vsel %vm139, %v134, %v136
    %v142 = vsel %vm139, %v132, %v134
    %v143 = vsel %vm139, %v138, %v132
    %s144 = scalar_lea.vmem [#allocation2], 2
    %v145 = vld [vmem:[%s144] ss:$8 sm:$0xf]
    %v147 = vlaneseq
    %v148 = vshrl.u32 %v147, 7
    %v149 = vsub.s32 0, %v148
    %v150 = vrot.slane %v145, %v149
    %v151 = vlaneseq
    %v152 = vshrl.u32 %v151, 7
    %v153 = vsub.s32 1, %v152
    %v154 = vrot.slane %v145, %v153
    %v155 = vlaneseq
    %v156 = vshrl.u32 %v155, 7
    %v157 = vsub.s32 2, %v156
    %v158 = vrot.slane %v145, %v157
    %v159 = vlaneseq
    %v160 = vshrl.u32 %v159, 7
    %v161 = vsub.s32 3, %v160
    %v162 = vrot.slane %v145, %v161
    %v167 = vmul.f32 %v143, %v150
    %v168 = vmul.f32 %v142, %v154
    %v169 = vmul.f32 %v141, %v158
    %v170 = vmul.f32 %v140, %v162
    %171 = vrot.lane.b32.xlu0 %v44, 1
    %v172 = vpop.permute.xlu0 %171
    %173 = vrot.lane.b32.xlu0 %v45, 1
    %v174 = vpop.permute.xlu0 %173
    %175 = vrot.lane.b32.xlu0 %v46, 1
    %v176 = vpop.permute.xlu0 %175
    %177 = vrot.lane.b32.xlu0 %v47, 1
    %v178 = vpop.permute.xlu0 %177
    %vm179 = vcmp.lt.s32.totalorder %v59, 1
    %v180 = vsel %vm179, %v176, %v178
    %v181 = vsel %vm179, %v174, %v176
    %v182 = vsel %vm179, %v172, %v174
    %v183 = vsel %vm179, %v178, %v172
    %s184 = scalar_lea.vmem [#allocation2], 3
    %v185 = vld [vmem:[%s184] ss:$8 sm:$0xf]
    %v187 = vlaneseq
    %v188 = vshrl.u32 %v187, 7
    %v189 = vsub.s32 0, %v188
    %v190 = vrot.slane %v185, %v189
    %v191 = vlaneseq
    %v192 = vshrl.u32 %v191, 7
    %v193 = vsub.s32 1, %v192
    %v194 = vrot.slane %v185, %v193
    %v195 = vlaneseq
    %v196 = vshrl.u32 %v195, 7
    %v197 = vsub.s32 2, %v196
    %v198 = vrot.slane %v185, %v197
    %v199 = vlaneseq
    %v200 = vshrl.u32 %v199, 7
    %v201 = vsub.s32 3, %v200
    %v202 = vrot.slane %v185, %v201
    %v207 = vmul.f32 %v183, %v190
    %v208 = vmul.f32 %v182, %v194
    %v209 = vmul.f32 %v181, %v198
    %v210 = vmul.f32 %v180, %v202
    %211 = vrot.lane.b32.xlu0 %v44, 127
    %v212 = vpop.permute.xlu0 %211
    %213 = vrot.lane.b32.xlu0 %v45, 127
    %v214 = vpop.permute.xlu0 %213
    %215 = vrot.lane.b32.xlu0 %v46, 127
    %v216 = vpop.permute.xlu0 %215
    %217 = vrot.lane.b32.xlu0 %v47, 127
    %v218 = vpop.permute.xlu0 %217
    %vm219 = vcmp.lt.s32.totalorder %v59, 127
    %v220 = vsel %vm219, %v216, %v218
    %v221 = vsel %vm219, %v214, %v216
    %v222 = vsel %vm219, %v212, %v214
    %v223 = vsel %vm219, %v218, %v212
    %s224 = scalar_lea.vmem [#allocation2], 4
    %v225 = vld [vmem:[%s224] ss:$8 sm:$0xf]
    %v227 = vlaneseq
    %v228 = vshrl.u32 %v227, 7
    %v229 = vsub.s32 0, %v228
    %v230 = vrot.slane %v225, %v229
    %v231 = vlaneseq
    %v232 = vshrl.u32 %v231, 7
    %v233 = vsub.s32 1, %v232
    %v234 = vrot.slane %v225, %v233
    %v235 = vlaneseq
    %v236 = vshrl.u32 %v235, 7
    %v237 = vsub.s32 2, %v236
    %v238 = vrot.slane %v225, %v237
    %v239 = vlaneseq
    %v240 = vshrl.u32 %v239, 7
    %v241 = vsub.s32 3, %v240
    %v242 = vrot.slane %v225, %v241
    %v247 = vmul.f32 %v222, %v230
    %v248 = vmul.f32 %v221, %v234
    %v249 = vmul.f32 %v220, %v238
    %v250 = vmul.f32 %v223, %v242
    %251 = vrot.lane.b32.xlu0 %v44, 113
    %v252 = vpop.permute.xlu0 %251
    %253 = vrot.lane.b32.xlu0 %v45, 113
    %v254 = vpop.permute.xlu0 %253
    %255 = vrot.lane.b32.xlu0 %v46, 113
    %v256 = vpop.permute.xlu0 %255
    %257 = vrot.lane.b32.xlu0 %v47, 113
    %v258 = vpop.permute.xlu0 %257
    %vm259 = vcmp.lt.s32.totalorder %v59, 113
    %v260 = vsel %vm259, %v256, %v258
    %v261 = vsel %vm259, %v254, %v256
    %v262 = vsel %vm259, %v252, %v254
    %v263 = vsel %vm259, %v258, %v252
    %s264 = scalar_lea.vmem [#allocation2], 5
    %v265 = vld [vmem:[%s264] ss:$8 sm:$0xf]
    %v267 = vlaneseq
    %v268 = vshrl.u32 %v267, 7
    %v269 = vsub.s32 0, %v268
    %v270 = vrot.slane %v265, %v269
    %v271 = vlaneseq
    %v272 = vshrl.u32 %v271, 7
    %v273 = vsub.s32 1, %v272
    %v274 = vrot.slane %v265, %v273
    %v275 = vlaneseq
    %v276 = vshrl.u32 %v275, 7
    %v277 = vsub.s32 2, %v276
    %v278 = vrot.slane %v265, %v277
    %v279 = vlaneseq
    %v280 = vshrl.u32 %v279, 7
    %v281 = vsub.s32 3, %v280
    %v282 = vrot.slane %v265, %v281
    %v287 = vmul.f32 %v262, %v270
    %v288 = vmul.f32 %v261, %v274
    %v289 = vmul.f32 %v260, %v278
    %v290 = vmul.f32 %v263, %v282
    %291 = vrot.lane.b32.xlu0 %v44, 112
    %v292 = vpop.permute.xlu0 %291
    %293 = vrot.lane.b32.xlu0 %v45, 112
    %v294 = vpop.permute.xlu0 %293
    %295 = vrot.lane.b32.xlu0 %v46, 112
    %v296 = vpop.permute.xlu0 %295
    %297 = vrot.lane.b32.xlu0 %v47, 112
    %v298 = vpop.permute.xlu0 %297
    %vm299 = vcmp.lt.s32.totalorder %v59, 112
    %v300 = vsel %vm299, %v296, %v298
    %v301 = vsel %vm299, %v294, %v296
    %v302 = vsel %vm299, %v292, %v294
    %v303 = vsel %vm299, %v298, %v292
    %s304 = scalar_lea.vmem [#allocation2], 6
    %v305 = vld [vmem:[%s304] ss:$8 sm:$0xf]
    %v307 = vlaneseq
    %v308 = vshrl.u32 %v307, 7
    %v309 = vsub.s32 0, %v308
    %v310 = vrot.slane %v305, %v309
    %v311 = vlaneseq
    %v312 = vshrl.u32 %v311, 7
    %v313 = vsub.s32 1, %v312
    %v314 = vrot.slane %v305, %v313
    %v315 = vlaneseq
    %v316 = vshrl.u32 %v315, 7
    %v317 = vsub.s32 2, %v316
    %v318 = vrot.slane %v305, %v317
    %v319 = vlaneseq
    %v320 = vshrl.u32 %v319, 7
    %v321 = vsub.s32 3, %v320
    %v322 = vrot.slane %v305, %v321
    %v327 = vmul.f32 %v302, %v310
    %v328 = vmul.f32 %v301, %v314
    %v329 = vmul.f32 %v300, %v318
    %v330 = vmul.f32 %v303, %v322
    %331 = vrot.lane.b32.xlu0 %v44, 111
    %v332 = vpop.permute.xlu0 %331
    %333 = vrot.lane.b32.xlu0 %v45, 111
    %v334 = vpop.permute.xlu0 %333
    %335 = vrot.lane.b32.xlu0 %v46, 111
    %v336 = vpop.permute.xlu0 %335
    %337 = vrot.lane.b32.xlu0 %v47, 111
    %v338 = vpop.permute.xlu0 %337
    %vm339 = vcmp.lt.s32.totalorder %v59, 111
    %v340 = vsel %vm339, %v336, %v338
    %v341 = vsel %vm339, %v334, %v336
    %v342 = vsel %vm339, %v332, %v334
    %v343 = vsel %vm339, %v338, %v332
    %s344 = scalar_lea.vmem [#allocation2], 7
    %v345 = vld [vmem:[%s344] ss:$8 sm:$0xf]
    %v347 = vlaneseq
    %v348 = vshrl.u32 %v347, 7
    %v349 = vsub.s32 0, %v348
    %v350 = vrot.slane %v345, %v349
    %v351 = vlaneseq
    %v352 = vshrl.u32 %v351, 7
    %v353 = vsub.s32 1, %v352
    %v354 = vrot.slane %v345, %v353
    %v355 = vlaneseq
    %v356 = vshrl.u32 %v355, 7
    %v357 = vsub.s32 2, %v356
    %v358 = vrot.slane %v345, %v357
    %v359 = vlaneseq
    %v360 = vshrl.u32 %v359, 7
    %v361 = vsub.s32 3, %v360
    %v362 = vrot.slane %v345, %v361
    %v367 = vmul.f32 %v342, %v350
    %v368 = vmul.f32 %v341, %v354
    %v369 = vmul.f32 %v340, %v358
    %v370 = vmul.f32 %v343, %v362
    %372 = vset.pattern.permute.xlu0 0
    %373 = vperm.xlu0 %372, %v49
    %v374 = vpop.permute.xlu0 %373
    %vm376 = vcmask 588800
    %v378 = vsel %vm376, %v48, 0
    %380 = vmatprep.subr.mxu0 %v88
    %381 = vmatpush1.msra.mxu0 %v87
    %382 = vmatprep.subr.mxu0 %v128
    %383 = vmatpush1.msra.mxu0 %v127
    %384 = vmatprep.subr.mxu0 %v168
    %385 = vmatpush1.msra.mxu0 %v167
    %386 = vmatprep.subr.mxu0 %v208
    %387 = vmatpush1.msra.mxu0 %v207
    %388 = vmatprep.subr.mxu0 %v45
    %389 = vmatpush1.msra.mxu0 %v44
    %390 = vmatprep.subr.mxu0 %v248
    %391 = vmatpush1.msra.mxu0 %v247
    %392 = vmatprep.subr.mxu0 %v288
    %393 = vmatpush1.msra.mxu0 %v287
    %394 = vmatprep.subr.mxu0 %v328
    %395 = vmatpush1.msra.mxu0 %v327
    %396 = vmatprep.subr.mxu0 %v368
    %397 = vmatpush1.msra.mxu0 %v367
    %398 = vmatprep.subr.mxu0 0.0
    %399 = vmatpush1.msra.mxu0 0.0
    %400 = vmatprep.subr.mxu0 0.0
    %401 = vmatpush1.msra.mxu0 0.0
    %402 = vmatprep.subr.mxu0 0.0
    %403 = vmatpush1.msra.mxu0 0.0
    %404 = vmatprep.subr.mxu0 0.0
    %405 = vmatpush1.msra.mxu0 0.0
    %406 = vmatprep.subr.mxu0 0.0
    %407 = vmatpush1.msra.mxu0 0.0
    %408 = vmatprep.subr.mxu0 0.0
    %409 = vmatpush1.msra.mxu0 0.0
    %410 = vmatprep.subr.mxu0 0.0
    %411 = vmatpush1.msra.mxu0 0.0
    %412 = vmatprep.subr.mxu0 0.0
    %413 = vmatpush1.msra.mxu0 0.0
    %414 = vmatprep.subr.mxu0 0.0
    %415 = vmatpush1.msra.mxu0 0.0
    %416 = vmatprep.subr.mxu0 0.0
    %417 = vmatpush1.msra.mxu0 0.0
    %418 = vmatprep.subr.mxu0 0.0
    %419 = vmatpush1.msra.mxu0 0.0
    %420 = vmatprep.subr.mxu0 0.0
    %421 = vmatpush1.msra.mxu0 0.0
    %422 = vmatprep.subr.mxu0 0.0
    %423 = vmatpush1.msra.mxu0 0.0
    %424 = vmatprep.subr.mxu0 0.0
    %425 = vmatpush1.msra.mxu0 0.0
    %426 = vmatprep.subr.mxu0 0.0
    %427 = vmatpush1.msra.mxu0 0.0
    %428 = vmatprep.subr.mxu0 0.0
    %429 = vmatpush1.msra.mxu0 0.0
    %430 = vmatprep.subr.mxu0 0.0
    %431 = vmatpush1.msra.mxu0 0.0
    %432 = vmatprep.subr.mxu0 0.0
    %433 = vmatpush1.msra.mxu0 0.0
    %434 = vmatprep.subr.mxu0 0.0
    %435 = vmatpush1.msra.mxu0 0.0
    %436 = vmatprep.subr.mxu0 0.0
    %437 = vmatpush1.msra.mxu0 0.0
    %438 = vmatprep.subr.mxu0 0.0
    %439 = vmatpush1.msra.mxu0 0.0
    %440 = vmatprep.subr.mxu0 0.0
    %441 = vmatpush1.msra.mxu0 0.0
    %442 = vmatprep.subr.mxu0 0.0
    %443 = vmatpush1.msra.mxu0 0.0
    %444 = vmatprep.mubr.f32.mxu0 0.0
    %445 = vmatmul.mubr.f32.gmra.mrb[0].mxu0 %v378
    %v446 = vpop.f32.mrb[0].mxu0
    %v447 = vadd.f32 %v374, %v446
    %v448 = vpop.f32.mrb[0].mxu0
    %v449 = vadd.f32 %v374, %v448
    %450 = vdwg.mxu0
    %451 = vmatprep.subr.mxu0 %v90
    %452 = vmatpush1.msra.mxu0 %v89
    %453 = vmatprep.subr.mxu0 %v130
    %454 = vmatpush1.msra.mxu0 %v129
    %455 = vmatprep.subr.mxu0 %v170
    %456 = vmatpush1.msra.mxu0 %v169
    %457 = vmatprep.subr.mxu0 %v210
    %458 = vmatpush1.msra.mxu0 %v209
    %459 = vmatprep.subr.mxu0 %v47
    %460 = vmatpush1.msra.mxu0 %v46
    %461 = vmatprep.subr.mxu0 %v250
    %462 = vmatpush1.msra.mxu0 %v249
    %463 = vmatprep.subr.mxu0 %v290
    %464 = vmatpush1.msra.mxu0 %v289
    %465 = vmatprep.subr.mxu0 %v330
    %466 = vmatpush1.msra.mxu0 %v329
    %467 = vmatprep.subr.mxu0 %v370
    %468 = vmatpush1.msra.mxu0 %v369
    %469 = vmatprep.subr.mxu0 0.0
    %470 = vmatpush1.msra.mxu0 0.0
    %471 = vmatprep.subr.mxu0 0.0
    %472 = vmatpush1.msra.mxu0 0.0
    %473 = vmatprep.subr.mxu0 0.0
    %474 = vmatpush1.msra.mxu0 0.0
    %475 = vmatprep.subr.mxu0 0.0
    %476 = vmatpush1.msra.mxu0 0.0
    %477 = vmatprep.subr.mxu0 0.0
    %478 = vmatpush1.msra.mxu0 0.0
    %479 = vmatprep.subr.mxu0 0.0
    %480 = vmatpush1.msra.mxu0 0.0
    %481 = vmatprep.subr.mxu0 0.0
    %482 = vmatpush1.msra.mxu0 0.0
    %483 = vmatprep.subr.mxu0 0.0
    %484 = vmatpush1.msra.mxu0 0.0
    %485 = vmatprep.subr.mxu0 0.0
    %486 = vmatpush1.msra.mxu0 0.0
    %487 = vmatprep.subr.mxu0 0.0
    %488 = vmatpush1.msra.mxu0 0.0
    %489 = vmatprep.subr.mxu0 0.0
    %490 = vmatpush1.msra.mxu0 0.0
    %491 = vmatprep.subr.mxu0 0.0
    %492 = vmatpush1.msra.mxu0 0.0
    %493 = vmatprep.subr.mxu0 0.0
    %494 = vmatpush1.msra.mxu0 0.0
    %495 = vmatprep.subr.mxu0 0.0
    %496 = vmatpush1.msra.mxu0 0.0
    %497 = vmatprep.subr.mxu0 0.0
    %498 = vmatpush1.msra.mxu0 0.0
    %499 = vmatprep.subr.mxu0 0.0
    %500 = vmatpush1.msra.mxu0 0.0
    %501 = vmatprep.subr.mxu0 0.0
    %502 = vmatpush1.msra.mxu0 0.0
    %503 = vmatprep.subr.mxu0 0.0
    %504 = vmatpush1.msra.mxu0 0.0
    %505 = vmatprep.subr.mxu0 0.0
    %506 = vmatpush1.msra.mxu0 0.0
    %507 = vmatprep.subr.mxu0 0.0
    %508 = vmatpush1.msra.mxu0 0.0
    %509 = vmatprep.subr.mxu0 0.0
    %510 = vmatpush1.msra.mxu0 0.0
    %511 = vmatprep.subr.mxu0 0.0
    %512 = vmatpush1.msra.mxu0 0.0
    %513 = vmatprep.subr.mxu0 0.0
    %514 = vmatpush1.msra.mxu0 0.0
    %515 = vmatprep.mubr.f32.mxu0 0.0
    %516 = vmatmul.mubr.f32.gmra.mrb[0].mxu0 %v378
    %v517 = vpop.f32.mrb[0].mxu0
    %v518 = vadd.f32 %v374, %v517
    %v519 = vpop.f32.mrb[0].mxu0
    %v520 = vadd.f32 %v374, %v519
    %521 = vdwg.mxu0
    %v522 = vxor.u32 %v447, 2147483648
    %v523 = vxor.u32 %v449, 2147483648
    %v524 = vxor.u32 %v518, 2147483648
    %v525 = vxor.u32 %v520, 2147483648
    %v526 = vmul.f32 %v522, 1.442695
    %v527 = vpow.pop %v526
    %v528 = vmul.f32 %v523, 1.442695
    %v529 = vpow.pop %v528
    %v530 = vmul.f32 %v524, 1.442695
    %v531 = vpow.pop %v530
    %v532 = vmul.f32 %v525, 1.442695
    %v533 = vpow.pop %v532
    %v534 = vadd.f32 %v527, 1.0
    %v535 = vadd.f32 %v529, 1.0
    %v536 = vadd.f32 %v531, 1.0
    %v537 = vadd.f32 %v533, 1.0
    %v538 = vrcp.pop %v534
    %v539 = vmul.f32 1.0, %v538
    %v540 = vrcp.pop %v535
    %v541 = vmul.f32 1.0, %v540
    %v542 = vrcp.pop %v536
    %v543 = vmul.f32 1.0, %v542
    %v544 = vrcp.pop %v537
    %v545 = vmul.f32 1.0, %v544
    %v546 = vmul.f32 %v447, %v539
    %v547 = vmul.f32 %v449, %v541
    %v548 = vmul.f32 %v518, %v543
    %v549 = vmul.f32 %v520, %v545
    %s550 = scalar_lea.vmem [#allocation5], 8
    %v551 = vld [vmem:[%s550] sm:$0xff]
    %s552 = scalar_lea.vmem %s3, 8
    %v553 = vld [vmem:[%s552] sm:$0xff]
    %554 = vrot.lane.b32.xlu0 %v546, 17
    %v555 = vpop.permute.xlu0 %554
    %556 = vrot.lane.b32.xlu0 %v547, 17
    %v557 = vpop.permute.xlu0 %556
    %558 = vrot.lane.b32.xlu0 %v548, 17
    %v559 = vpop.permute.xlu0 %558
    %560 = vrot.lane.b32.xlu0 %v549, 17
    %v561 = vpop.permute.xlu0 %560
    %v562 = vsel %vm60, %v559, %v561
    %v563 = vsel %vm60, %v557, %v559
    %v564 = vsel %vm60, %v555, %v557
    %v565 = vsel %vm60, %v561, %v555
    %v566 = vmul.f32 %v565, %v70
    %v567 = vmul.f32 %v564, %v74
    %v568 = vmul.f32 %v563, %v78
    %v569 = vmul.f32 %v562, %v82
    %570 = vrot.lane.b32.xlu0 %v546, 16
    %v571 = vpop.permute.xlu0 %570
    %572 = vrot.lane.b32.xlu0 %v547, 16
    %v573 = vpop.permute.xlu0 %572
    %574 = vrot.lane.b32.xlu0 %v548, 16
    %v575 = vpop.permute.xlu0 %574
    %576 = vrot.lane.b32.xlu0 %v549, 16
    %v577 = vpop.permute.xlu0 %576
    %v578 = vsel %vm99, %v575, %v577
    %v579 = vsel %vm99, %v573, %v575
    %v580 = vsel %vm99, %v571, %v573
    %v581 = vsel %vm99, %v577, %v571
    %v582 = vmul.f32 %v581, %v110
    %v583 = vmul.f32 %v580, %v114
    %v584 = vmul.f32 %v579, %v118
    %v585 = vmul.f32 %v578, %v122
    %586 = vrot.lane.b32.xlu0 %v546, 15
    %v587 = vpop.permute.xlu0 %586
    %588 = vrot.lane.b32.xlu0 %v547, 15
    %v589 = vpop.permute.xlu0 %588
    %590 = vrot.lane.b32.xlu0 %v548, 15
    %v591 = vpop.permute.xlu0 %590
    %592 = vrot.lane.b32.xlu0 %v549, 15
    %v593 = vpop.permute.xlu0 %592
    %v594 = vsel %vm139, %v591, %v593
    %v595 = vsel %vm139, %v589, %v591
    %v596 = vsel %vm139, %v587, %v589
    %v597 = vsel %vm139, %v593, %v587
    %v598 = vmul.f32 %v597, %v150
    %v599 = vmul.f32 %v596, %v154
    %v600 = vmul.f32 %v595, %v158
    %v601 = vmul.f32 %v594, %v162
    %602 = vrot.lane.b32.xlu0 %v546, 1
    %v603 = vpop.permute.xlu0 %602
    %604 = vrot.lane.b32.xlu0 %v547, 1
    %v605 = vpop.permute.xlu0 %604
    %606 = vrot.lane.b32.xlu0 %v548, 1
    %v607 = vpop.permute.xlu0 %606
    %608 = vrot.lane.b32.xlu0 %v549, 1
    %v609 = vpop.permute.xlu0 %608
    %v610 = vsel %vm179, %v607, %v609
    %v611 = vsel %vm179, %v605, %v607
    %v612 = vsel %vm179, %v603, %v605
    %v613 = vsel %vm179, %v609, %v603
    %v614 = vmul.f32 %v613, %v190
    %v615 = vmul.f32 %v612, %v194
    %v616 = vmul.f32 %v611, %v198
    %v617 = vmul.f32 %v610, %v202
    %618 = vrot.lane.b32.xlu0 %v546, 127
    %v619 = vpop.permute.xlu0 %618
    %620 = vrot.lane.b32.xlu0 %v547, 127
    %v621 = vpop.permute.xlu0 %620
    %622 = vrot.lane.b32.xlu0 %v548, 127
    %v623 = vpop.permute.xlu0 %622
    %624 = vrot.lane.b32.xlu0 %v549, 127
    %v625 = vpop.permute.xlu0 %624
    %v626 = vsel %vm219, %v623, %v625
    %v627 = vsel %vm219, %v621, %v623
    %v628 = vsel %vm219, %v619, %v621
    %v629 = vsel %vm219, %v625, %v619
    %v630 = vmul.f32 %v628, %v230
    %v631 = vmul.f32 %v627, %v234
    %v632 = vmul.f32 %v626, %v238
    %v633 = vmul.f32 %v629, %v242
    %634 = vrot.lane.b32.xlu0 %v546, 113
    %v635 = vpop.permute.xlu0 %634
    %636 = vrot.lane.b32.xlu0 %v547, 113
    %v637 = vpop.permute.xlu0 %636
    %638 = vrot.lane.b32.xlu0 %v548, 113
    %v639 = vpop.permute.xlu0 %638
    %640 = vrot.lane.b32.xlu0 %v549, 113
    %v641 = vpop.permute.xlu0 %640
    %v642 = vsel %vm259, %v639, %v641
    %v643 = vsel %vm259, %v637, %v639
    %v644 = vsel %vm259, %v635, %v637
    %v645 = vsel %vm259, %v641, %v635
    %v646 = vmul.f32 %v644, %v270
    %v647 = vmul.f32 %v643, %v274
    %v648 = vmul.f32 %v642, %v278
    %v649 = vmul.f32 %v645, %v282
    %650 = vrot.lane.b32.xlu0 %v546, 112
    %v651 = vpop.permute.xlu0 %650
    %652 = vrot.lane.b32.xlu0 %v547, 112
    %v653 = vpop.permute.xlu0 %652
    %654 = vrot.lane.b32.xlu0 %v548, 112
    %v655 = vpop.permute.xlu0 %654
    %656 = vrot.lane.b32.xlu0 %v549, 112
    %v657 = vpop.permute.xlu0 %656
    %v658 = vsel %vm299, %v655, %v657
    %v659 = vsel %vm299, %v653, %v655
    %v660 = vsel %vm299, %v651, %v653
    %v661 = vsel %vm299, %v657, %v651
    %v662 = vmul.f32 %v660, %v310
    %v663 = vmul.f32 %v659, %v314
    %v664 = vmul.f32 %v658, %v318
    %v665 = vmul.f32 %v661, %v322
    %666 = vrot.lane.b32.xlu0 %v546, 111
    %v667 = vpop.permute.xlu0 %666
    %668 = vrot.lane.b32.xlu0 %v547, 111
    %v669 = vpop.permute.xlu0 %668
    %670 = vrot.lane.b32.xlu0 %v548, 111
    %v671 = vpop.permute.xlu0 %670
    %672 = vrot.lane.b32.xlu0 %v549, 111
    %v673 = vpop.permute.xlu0 %672
    %v674 = vsel %vm339, %v671, %v673
    %v675 = vsel %vm339, %v669, %v671
    %v676 = vsel %vm339, %v667, %v669
    %v677 = vsel %vm339, %v673, %v667
    %v678 = vmul.f32 %v676, %v350
    %v679 = vmul.f32 %v675, %v354
    %v680 = vmul.f32 %v674, %v358
    %v681 = vmul.f32 %v677, %v362
    %683 = vset.pattern.permute.xlu0 0
    %684 = vperm.xlu0 %683, %v553
    %v685 = vpop.permute.xlu0 %684
    %v688 = vsel %vm376, %v551, 0
    %690 = vmatprep.subr.mxu0 %v567
    %691 = vmatpush1.msra.mxu0 %v566
    %692 = vmatprep.subr.mxu0 %v583
    %693 = vmatpush1.msra.mxu0 %v582
    %694 = vmatprep.subr.mxu0 %v599
    %695 = vmatpush1.msra.mxu0 %v598
    %696 = vmatprep.subr.mxu0 %v615
    %697 = vmatpush1.msra.mxu0 %v614
    %698 = vmatprep.subr.mxu0 %v547
    %699 = vmatpush1.msra.mxu0 %v546
    %700 = vmatprep.subr.mxu0 %v631
    %701 = vmatpush1.msra.mxu0 %v630
    %702 = vmatprep.subr.mxu0 %v647
    %703 = vmatpush1.msra.mxu0 %v646
    %704 = vmatprep.subr.mxu0 %v663
    %705 = vmatpush1.msra.mxu0 %v662
    %706 = vmatprep.subr.mxu0 %v679
    %707 = vmatpush1.msra.mxu0 %v678
    %708 = vmatprep.subr.mxu0 0.0
    %709 = vmatpush1.msra.mxu0 0.0
    %710 = vmatprep.subr.mxu0 0.0
    %711 = vmatpush1.msra.mxu0 0.0
    %712 = vmatprep.subr.mxu0 0.0
    %713 = vmatpush1.msra.mxu0 0.0
    %714 = vmatprep.subr.mxu0 0.0
    %715 = vmatpush1.msra.mxu0 0.0
    %716 = vmatprep.subr.mxu0 0.0
    %717 = vmatpush1.msra.mxu0 0.0
    %718 = vmatprep.subr.mxu0 0.0
    %719 = vmatpush1.msra.mxu0 0.0
    %720 = vmatprep.subr.mxu0 0.0
    %721 = vmatpush1.msra.mxu0 0.0
    %722 = vmatprep.subr.mxu0 0.0
    %723 = vmatpush1.msra.mxu0 0.0
    %724 = vmatprep.subr.mxu0 0.0
    %725 = vmatpush1.msra.mxu0 0.0
    %726 = vmatprep.subr.mxu0 0.0
    %727 = vmatpush1.msra.mxu0 0.0
    %728 = vmatprep.subr.mxu0 0.0
    %729 = vmatpush1.msra.mxu0 0.0
    %730 = vmatprep.subr.mxu0 0.0
    %731 = vmatpush1.msra.mxu0 0.0
    %732 = vmatprep.subr.mxu0 0.0
    %733 = vmatpush1.msra.mxu0 0.0
    %734 = vmatprep.subr.mxu0 0.0
    %735 = vmatpush1.msra.mxu0 0.0
    %736 = vmatprep.subr.mxu0 0.0
    %737 = vmatpush1.msra.mxu0 0.0
    %738 = vmatprep.subr.mxu0 0.0
    %739 = vmatpush1.msra.mxu0 0.0
    %740 = vmatprep.subr.mxu0 0.0
    %741 = vmatpush1.msra.mxu0 0.0
    %742 = vmatprep.subr.mxu0 0.0
    %743 = vmatpush1.msra.mxu0 0.0
    %744 = vmatprep.subr.mxu0 0.0
    %745 = vmatpush1.msra.mxu0 0.0
    %746 = vmatprep.subr.mxu0 0.0
    %747 = vmatpush1.msra.mxu0 0.0
    %748 = vmatprep.subr.mxu0 0.0
    %749 = vmatpush1.msra.mxu0 0.0
    %750 = vmatprep.subr.mxu0 0.0
    %751 = vmatpush1.msra.mxu0 0.0
    %752 = vmatprep.subr.mxu0 0.0
    %753 = vmatpush1.msra.mxu0 0.0
    %754 = vmatprep.mubr.f32.mxu0 0.0
    %755 = vmatmul.mubr.f32.gmra.mrb[0].mxu0 %v688
    %v756 = vpop.f32.mrb[0].mxu0
    %v757 = vadd.f32 %v685, %v756
    %v758 = vpop.f32.mrb[0].mxu0
    %v759 = vadd.f32 %v685, %v758
    %760 = vdwg.mxu0
    %761 = vmatprep.subr.mxu0 %v569
    %762 = vmatpush1.msra.mxu0 %v568
    %763 = vmatprep.subr.mxu0 %v585
    %764 = vmatpush1.msra.mxu0 %v584
    %765 = vmatprep.subr.mxu0 %v601
    %766 = vmatpush1.msra.mxu0 %v600
    %767 = vmatprep.subr.mxu0 %v617
    %768 = vmatpush1.msra.mxu0 %v616
    %769 = vmatprep.subr.mxu0 %v549
    %770 = vmatpush1.msra.mxu0 %v548
    %771 = vmatprep.subr.mxu0 %v633
    %772 = vmatpush1.msra.mxu0 %v632
    %773 = vmatprep.subr.mxu0 %v649
    %774 = vmatpush1.msra.mxu0 %v648
    %775 = vmatprep.subr.mxu0 %v665
    %776 = vmatpush1.msra.mxu0 %v664
    %777 = vmatprep.subr.mxu0 %v681
    %778 = vmatpush1.msra.mxu0 %v680
    %779 = vmatprep.subr.mxu0 0.0
    %780 = vmatpush1.msra.mxu0 0.0
    %781 = vmatprep.subr.mxu0 0.0
    %782 = vmatpush1.msra.mxu0 0.0
    %783 = vmatprep.subr.mxu0 0.0
    %784 = vmatpush1.msra.mxu0 0.0
    %785 = vmatprep.subr.mxu0 0.0
    %786 = vmatpush1.msra.mxu0 0.0
    %787 = vmatprep.subr.mxu0 0.0
    %788 = vmatpush1.msra.mxu0 0.0
    %789 = vmatprep.subr.mxu0 0.0
    %790 = vmatpush1.msra.mxu0 0.0
    %791 = vmatprep.subr.mxu0 0.0
    %792 = vmatpush1.msra.mxu0 0.0
    %793 = vmatprep.subr.mxu0 0.0
    %794 = vmatpush1.msra.mxu0 0.0
    %795 = vmatprep.subr.mxu0 0.0
    %796 = vmatpush1.msra.mxu0 0.0
    %797 = vmatprep.subr.mxu0 0.0
    %798 = vmatpush1.msra.mxu0 0.0
    %799 = vmatprep.subr.mxu0 0.0
    %800 = vmatpush1.msra.mxu0 0.0
    %801 = vmatprep.subr.mxu0 0.0
    %802 = vmatpush1.msra.mxu0 0.0
    %803 = vmatprep.subr.mxu0 0.0
    %804 = vmatpush1.msra.mxu0 0.0
    %805 = vmatprep.subr.mxu0 0.0
    %806 = vmatpush1.msra.mxu0 0.0
    %807 = vmatprep.subr.mxu0 0.0
    %808 = vmatpush1.msra.mxu0 0.0
    %809 = vmatprep.subr.mxu0 0.0
    %810 = vmatpush1.msra.mxu0 0.0
    %811 = vmatprep.subr.mxu0 0.0
    %812 = vmatpush1.msra.mxu0 0.0
    %813 = vmatprep.subr.mxu0 0.0
    %814 = vmatpush1.msra.mxu0 0.0
    %815 = vmatprep.subr.mxu0 0.0
    %816 = vmatpush1.msra.mxu0 0.0
    %817 = vmatprep.subr.mxu0 0.0
    %818 = vmatpush1.msra.mxu0 0.0
    %819 = vmatprep.subr.mxu0 0.0
    %820 = vmatpush1.msra.mxu0 0.0
    %821 = vmatprep.subr.mxu0 0.0
    %822 = vmatpush1.msra.mxu0 0.0
    %823 = vmatprep.subr.mxu0 0.0
    %824 = vmatpush1.msra.mxu0 0.0
    %825 = vmatprep.mubr.f32.mxu0 0.0
    %826 = vmatmul.mubr.f32.gmra.mrb[0].mxu0 %v688
    %v827 = vpop.f32.mrb[0].mxu0
    %v828 = vadd.f32 %v685, %v827
    %v829 = vpop.f32.mrb[0].mxu0
    %v830 = vadd.f32 %v685, %v829
    %831 = vdwg.mxu0
    %v832 = vadd.f32 %v757, %v44
    %v833 = vadd.f32 %v759, %v45
    %v834 = vadd.f32 %v828, %v46
    %v835 = vadd.f32 %v830, %v47
    %v836 = vxor.u32 %v832, 2147483648
    %v837 = vxor.u32 %v833, 2147483648
    %v838 = vxor.u32 %v834, 2147483648
    %v839 = vxor.u32 %v835, 2147483648
    %v840 = vmul.f32 %v836, 1.442695
    %v841 = vpow.pop %v840
    %v842 = vmul.f32 %v837, 1.442695
    %v843 = vpow.pop %v842
    %v844 = vmul.f32 %v838, 1.442695
    %v845 = vpow.pop %v844
    %v846 = vmul.f32 %v839, 1.442695
    %v847 = vpow.pop %v846
    %v848 = vadd.f32 %v841, 1.0
    %v849 = vadd.f32 %v843, 1.0
    %v850 = vadd.f32 %v845, 1.0
    %v851 = vadd.f32 %v847, 1.0
    %v852 = vrcp.pop %v848
    %v853 = vmul.f32 1.0, %v852
    %v854 = vrcp.pop %v849
    %v855 = vmul.f32 1.0, %v854
    %v856 = vrcp.pop %v850
    %v857 = vmul.f32 1.0, %v856
    %v858 = vrcp.pop %v851
    %v859 = vmul.f32 1.0, %v858
    %v860 = vmul.f32 %v832, %v853
    %v861 = vmul.f32 %v833, %v855
    %v862 = vmul.f32 %v834, %v857
    %v863 = vmul.f32 %v835, %v859
    %v864 = vadd.f32 %v860, %v832
    %v865 = vadd.f32 %v861, %v833
    %v866 = vadd.f32 %v862, %v834
    %v867 = vadd.f32 %v863, %v835
    %s868 = scalar_lea.vmem [#allocation5], 16
    %v869 = vld [vmem:[%s868] sm:$0xff]
    %s870 = scalar_lea.vmem %s3, 16
    %v871 = vld [vmem:[%s870] sm:$0xff]
    %872 = vrot.lane.b32.xlu0 %v864, 17
    %v873 = vpop.permute.xlu0 %872
    %874 = vrot.lane.b32.xlu0 %v865, 17
    %v875 = vpop.permute.xlu0 %874
    %876 = vrot.lane.b32.xlu0 %v866, 17
    %v877 = vpop.permute.xlu0 %876
    %878 = vrot.lane.b32.xlu0 %v867, 17
    %v879 = vpop.permute.xlu0 %878
    %v880 = vsel %vm60, %v877, %v879
    %v881 = vsel %vm60, %v875, %v877
    %v882 = vsel %vm60, %v873, %v875
    %v883 = vsel %vm60, %v879, %v873
    %v884 = vmul.f32 %v883, %v70
    %v885 = vmul.f32 %v882, %v74
    %v886 = vmul.f32 %v881, %v78
    %v887 = vmul.f32 %v880, %v82
    %888 = vrot.lane.b32.xlu0 %v864, 16
    %v889 = vpop.permute.xlu0 %888
    %890 = vrot.lane.b32.xlu0 %v865, 16
    %v891 = vpop.permute.xlu0 %890
    %892 = vrot.lane.b32.xlu0 %v866, 16
    %v893 = vpop.permute.xlu0 %892
    %894 = vrot.lane.b32.xlu0 %v867, 16
    %v895 = vpop.permute.xlu0 %894
    %v896 = vsel %vm99, %v893, %v895
    %v897 = vsel %vm99, %v891, %v893
    %v898 = vsel %vm99, %v889, %v891
    %v899 = vsel %vm99, %v895, %v889
    %v900 = vmul.f32 %v899, %v110
    %v901 = vmul.f32 %v898, %v114
    %v902 = vmul.f32 %v897, %v118
    %v903 = vmul.f32 %v896, %v122
    %904 = vrot.lane.b32.xlu0 %v864, 15
    %v905 = vpop.permute.xlu0 %904
    %906 = vrot.lane.b32.xlu0 %v865, 15
    %v907 = vpop.permute.xlu0 %906
    %908 = vrot.lane.b32.xlu0 %v866, 15
    %v909 = vpop.permute.xlu0 %908
    %910 = vrot.lane.b32.xlu0 %v867, 15
    %v911 = vpop.permute.xlu0 %910
    %v912 = vsel %vm139, %v909, %v911
    %v913 = vsel %vm139, %v907, %v909
    %v914 = vsel %vm139, %v905, %v907
    %v915 = vsel %vm139, %v911, %v905
    %v916 = vmul.f32 %v915, %v150
    %v917 = vmul.f32 %v914, %v154
    %v918 = vmul.f32 %v913, %v158
    %v919 = vmul.f32 %v912, %v162
    %920 = vrot.lane.b32.xlu0 %v864, 1
    %v921 = vpop.permute.xlu0 %920
    %922 = vrot.lane.b32.xlu0 %v865, 1
    %v923 = vpop.permute.xlu0 %922
    %924 = vrot.lane.b32.xlu0 %v866, 1
    %v925 = vpop.permute.xlu0 %924
    %926 = vrot.lane.b32.xlu0 %v867, 1
    %v927 = vpop.permute.xlu0 %926
    %v928 = vsel %vm179, %v925, %v927
    %v929 = vsel %vm179, %v923, %v925
    %v930 = vsel %vm179, %v921, %v923
    %v931 = vsel %vm179, %v927, %v921
    %v932 = vmul.f32 %v931, %v190
    %v933 = vmul.f32 %v930, %v194
    %v934 = vmul.f32 %v929, %v198
    %v935 = vmul.f32 %v928, %v202
    %936 = vrot.lane.b32.xlu0 %v864, 127
    %v937 = vpop.permute.xlu0 %936
    %938 = vrot.lane.b32.xlu0 %v865, 127
    %v939 = vpop.permute.xlu0 %938
    %940 = vrot.lane.b32.xlu0 %v866, 127
    %v941 = vpop.permute.xlu0 %940
    %942 = vrot.lane.b32.xlu0 %v867, 127
    %v943 = vpop.permute.xlu0 %942
    %v944 = vsel %vm219, %v941, %v943
    %v945 = vsel %vm219, %v939, %v941
    %v946 = vsel %vm219, %v937, %v939
    %v947 = vsel %vm219, %v943, %v937
    %v948 = vmul.f32 %v946, %v230
    %v949 = vmul.f32 %v945, %v234
    %v950 = vmul.f32 %v944, %v238
    %v951 = vmul.f32 %v947, %v242
    %952 = vrot.lane.b32.xlu0 %v864, 113
    %v953 = vpop.permute.xlu0 %952
    %954 = vrot.lane.b32.xlu0 %v865, 113
    %v955 = vpop.permute.xlu0 %954
    %956 = vrot.lane.b32.xlu0 %v866, 113
    %v957 = vpop.permute.xlu0 %956
    %958 = vrot.lane.b32.xlu0 %v867, 113
    %v959 = vpop.permute.xlu0 %958
    %v960 = vsel %vm259, %v957, %v959
    %v961 = vsel %vm259, %v955, %v957
    %v962 = vsel %vm259, %v953, %v955
    %v963 = vsel %vm259, %v959, %v953
    %v964 = vmul.f32 %v962, %v270
    %v965 = vmul.f32 %v961, %v274
    %v966 = vmul.f32 %v960, %v278
    %v967 = vmul.f32 %v963, %v282
    %968 = vrot.lane.b32.xlu0 %v864, 112
    %v969 = vpop.permute.xlu0 %968
    %970 = vrot.lane.b32.xlu0 %v865, 112
    %v971 = vpop.permute.xlu0 %970
    %972 = vrot.lane.b32.xlu0 %v866, 112
    %v973 = vpop.permute.xlu0 %972
    %974 = vrot.lane.b32.xlu0 %v867, 112
    %v975 = vpop.permute.xlu0 %974
    %v976 = vsel %vm299, %v973, %v975
    %v977 = vsel %vm299, %v971, %v973
    %v978 = vsel %vm299, %v969, %v971
    %v979 = vsel %vm299, %v975, %v969
    %v980 = vmul.f32 %v978, %v310
    %v981 = vmul.f32 %v977, %v314
    %v982 = vmul.f32 %v976, %v318
    %v983 = vmul.f32 %v979, %v322
    %984 = vrot.lane.b32.xlu0 %v864, 111
    %v985 = vpop.permute.xlu0 %984
    %986 = vrot.lane.b32.xlu0 %v865, 111
    %v987 = vpop.permute.xlu0 %986
    %988 = vrot.lane.b32.xlu0 %v866, 111
    %v989 = vpop.permute.xlu0 %988
    %990 = vrot.lane.b32.xlu0 %v867, 111
    %v991 = vpop.permute.xlu0 %990
    %v992 = vsel %vm339, %v989, %v991
    %v993 = vsel %vm339, %v987, %v989
    %v994 = vsel %vm339, %v985, %v987
    %v995 = vsel %vm339, %v991, %v985
    %v996 = vmul.f32 %v994, %v350
    %v997 = vmul.f32 %v993, %v354
    %v998 = vmul.f32 %v992, %v358
    %v999 = vmul.f32 %v995, %v362
    %1001 = vset.pattern.permute.xlu0 0
    %1002 = vperm.xlu0 %1001, %v871
    %v1003 = vpop.permute.xlu0 %1002
    %v1006 = vsel %vm376, %v869, 0
    %1008 = vmatprep.subr.mxu0 %v885
    %1009 = vmatpush1.msra.mxu0 %v884
    %1010 = vmatprep.subr.mxu0 %v901
    %1011 = vmatpush1.msra.mxu0 %v900
    %1012 = vmatprep.subr.mxu0 %v917
    %1013 = vmatpush1.msra.mxu0 %v916
    %1014 = vmatprep.subr.mxu0 %v933
    %1015 = vmatpush1.msra.mxu0 %v932
    %1016 = vmatprep.subr.mxu0 %v865
    %1017 = vmatpush1.msra.mxu0 %v864
    %1018 = vmatprep.subr.mxu0 %v949
    %1019 = vmatpush1.msra.mxu0 %v948
    %1020 = vmatprep.subr.mxu0 %v965
    %1021 = vmatpush1.msra.mxu0 %v964
    %1022 = vmatprep.subr.mxu0 %v981
    %1023 = vmatpush1.msra.mxu0 %v980
    %1024 = vmatprep.subr.mxu0 %v997
    %1025 = vmatpush1.msra.mxu0 %v996
    %1026 = vmatprep.subr.mxu0 0.0
    %1027 = vmatpush1.msra.mxu0 0.0
    %1028 = vmatprep.subr.mxu0 0.0
    %1029 = vmatpush1.msra.mxu0 0.0
    %1030 = vmatprep.subr.mxu0 0.0
    %1031 = vmatpush1.msra.mxu0 0.0
    %1032 = vmatprep.subr.mxu0 0.0
    %1033 = vmatpush1.msra.mxu0 0.0
    %1034 = vmatprep.subr.mxu0 0.0
    %1035 = vmatpush1.msra.mxu0 0.0
    %1036 = vmatprep.subr.mxu0 0.0
    %1037 = vmatpush1.msra.mxu0 0.0
    %1038 = vmatprep.subr.mxu0 0.0
    %1039 = vmatpush1.msra.mxu0 0.0
    %1040 = vmatprep.subr.mxu0 0.0
    %1041 = vmatpush1.msra.mxu0 0.0
    %1042 = vmatprep.subr.mxu0 0.0
    %1043 = vmatpush1.msra.mxu0 0.0
    %1044 = vmatprep.subr.mxu0 0.0
    %1045 = vmatpush1.msra.mxu0 0.0
    %1046 = vmatprep.subr.mxu0 0.0
    %1047 = vmatpush1.msra.mxu0 0.0
    %1048 = vmatprep.subr.mxu0 0.0
    %1049 = vmatpush1.msra.mxu0 0.0
    %1050 = vmatprep.subr.mxu0 0.0
    %1051 = vmatpush1.msra.mxu0 0.0
    %1052 = vmatprep.subr.mxu0 0.0
    %1053 = vmatpush1.msra.mxu0 0.0
    %1054 = vmatprep.subr.mxu0 0.0
    %1055 = vmatpush1.msra.mxu0 0.0
    %1056 = vmatprep.subr.mxu0 0.0
    %1057 = vmatpush1.msra.mxu0 0.0
    %1058 = vmatprep.subr.mxu0 0.0
    %1059 = vmatpush1.msra.mxu0 0.0
    %1060 = vmatprep.subr.mxu0 0.0
    %1061 = vmatpush1.msra.mxu0 0.0
    %1062 = vmatprep.subr.mxu0 0.0
    %1063 = vmatpush1.msra.mxu0 0.0
    %1064 = vmatprep.subr.mxu0 0.0
    %1065 = vmatpush1.msra.mxu0 0.0
    %1066 = vmatprep.subr.mxu0 0.0
    %1067 = vmatpush1.msra.mxu0 0.0
    %1068 = vmatprep.subr.mxu0 0.0
    %1069 = vmatpush1.msra.mxu0 0.0
    %1070 = vmatprep.subr.mxu0 0.0
    %1071 = vmatpush1.msra.mxu0 0.0
    %1072 = vmatprep.mubr.f32.mxu0 0.0
    %1073 = vmatmul.mubr.f32.gmra.mrb[0].mxu0 %v1006
    %v1074 = vpop.f32.mrb[0].mxu0
    %v1075 = vadd.f32 %v1003, %v1074
    %v1076 = vpop.f32.mrb[0].mxu0
    %v1077 = vadd.f32 %v1003, %v1076
    %1078 = vdwg.mxu0
    %1079 = vmatprep.subr.mxu0 %v887
    %1080 = vmatpush1.msra.mxu0 %v886
    %1081 = vmatprep.subr.mxu0 %v903
    %1082 = vmatpush1.msra.mxu0 %v902
    %1083 = vmatprep.subr.mxu0 %v919
    %1084 = vmatpush1.msra.mxu0 %v918
    %1085 = vmatprep.subr.mxu0 %v935
    %1086 = vmatpush1.msra.mxu0 %v934
    %1087 = vmatprep.subr.mxu0 %v867
    %1088 = vmatpush1.msra.mxu0 %v866
    %1089 = vmatprep.subr.mxu0 %v951
    %1090 = vmatpush1.msra.mxu0 %v950
    %1091 = vmatprep.subr.mxu0 %v967
    %1092 = vmatpush1.msra.mxu0 %v966
    %1093 = vmatprep.subr.mxu0 %v983
    %1094 = vmatpush1.msra.mxu0 %v982
    %1095 = vmatprep.subr.mxu0 %v999
    %1096 = vmatpush1.msra.mxu0 %v998
    %1097 = vmatprep.subr.mxu0 0.0
    %1098 = vmatpush1.msra.mxu0 0.0
    %1099 = vmatprep.subr.mxu0 0.0
    %1100 = vmatpush1.msra.mxu0 0.0
    %1101 = vmatprep.subr.mxu0 0.0
    %1102 = vmatpush1.msra.mxu0 0.0
    %1103 = vmatprep.subr.mxu0 0.0
    %1104 = vmatpush1.msra.mxu0 0.0
    %1105 = vmatprep.subr.mxu0 0.0
    %1106 = vmatpush1.msra.mxu0 0.0
    %1107 = vmatprep.subr.mxu0 0.0
    %1108 = vmatpush1.msra.mxu0 0.0
    %1109 = vmatprep.subr.mxu0 0.0
    %1110 = vmatpush1.msra.mxu0 0.0
    %1111 = vmatprep.subr.mxu0 0.0
    %1112 = vmatpush1.msra.mxu0 0.0
    %1113 = vmatprep.subr.mxu0 0.0
    %1114 = vmatpush1.msra.mxu0 0.0
    %1115 = vmatprep.subr.mxu0 0.0
    %1116 = vmatpush1.msra.mxu0 0.0
    %1117 = vmatprep.subr.mxu0 0.0
    %1118 = vmatpush1.msra.mxu0 0.0
    %1119 = vmatprep.subr.mxu0 0.0
    %1120 = vmatpush1.msra.mxu0 0.0
    %1121 = vmatprep.subr.mxu0 0.0
    %1122 = vmatpush1.msra.mxu0 0.0
    %1123 = vmatprep.subr.mxu0 0.0
    %1124 = vmatpush1.msra.mxu0 0.0
    %1125 = vmatprep.subr.mxu0 0.0
    %1126 = vmatpush1.msra.mxu0 0.0
    %1127 = vmatprep.subr.mxu0 0.0
    %1128 = vmatpush1.msra.mxu0 0.0
    %1129 = vmatprep.subr.mxu0 0.0
    %1130 = vmatpush1.msra.mxu0 0.0
    %1131 = vmatprep.subr.mxu0 0.0
    %1132 = vmatpush1.msra.mxu0 0.0
    %1133 = vmatprep.subr.mxu0 0.0
    %1134 = vmatpush1.msra.mxu0 0.0
    %1135 = vmatprep.subr.mxu0 0.0
    %1136 = vmatpush1.msra.mxu0 0.0
    %1137 = vmatprep.subr.mxu0 0.0
    %1138 = vmatpush1.msra.mxu0 0.0
    %1139 = vmatprep.subr.mxu0 0.0
    %1140 = vmatpush1.msra.mxu0 0.0
    %1141 = vmatprep.subr.mxu0 0.0
    %1142 = vmatpush1.msra.mxu0 0.0
    %1143 = vmatprep.mubr.f32.mxu0 0.0
    %1144 = vmatmul.mubr.f32.gmra.mrb[0].mxu0 %v1006
    %v1145 = vpop.f32.mrb[0].mxu0
    %v1146 = vadd.f32 %v1003, %v1145
    %v1147 = vpop.f32.mrb[0].mxu0
    %v1148 = vadd.f32 %v1003, %v1147
    %1149 = vdwg.mxu0
    %v1150 = vxor.u32 %v1075, 2147483648
    %v1151 = vxor.u32 %v1077, 2147483648
    %v1152 = vxor.u32 %v1146, 2147483648
    %v1153 = vxor.u32 %v1148, 2147483648
    %v1154 = vmul.f32 %v1150, 1.442695
    %v1155 = vpow.pop %v1154
    %v1156 = vmul.f32 %v1151, 1.442695
    %v1157 = vpow.pop %v1156
    %v1158 = vmul.f32 %v1152, 1.442695
    %v1159 = vpow.pop %v1158
    %v1160 = vmul.f32 %v1153, 1.442695
    %v1161 = vpow.pop %v1160
    %v1162 = vadd.f32 %v1155, 1.0
    %v1163 = vadd.f32 %v1157, 1.0
    %v1164 = vadd.f32 %v1159, 1.0
    %v1165 = vadd.f32 %v1161, 1.0
    %v1166 = vrcp.pop %v1162
    %v1167 = vmul.f32 1.0, %v1166
    %v1168 = vrcp.pop %v1163
    %v1169 = vmul.f32 1.0, %v1168
    %v1170 = vrcp.pop %v1164
    %v1171 = vmul.f32 1.0, %v1170
    %v1172 = vrcp.pop %v1165
    %v1173 = vmul.f32 1.0, %v1172
    %v1174 = vmul.f32 %v1075, %v1167
    %v1175 = vmul.f32 %v1077, %v1169
    %v1176 = vmul.f32 %v1146, %v1171
    %v1177 = vmul.f32 %v1148, %v1173
    %s1178 = scalar_lea.vmem [#allocation5], 24
    %v1179 = vld [vmem:[%s1178] sm:$0xff]
    %s1180 = scalar_lea.vmem %s3, 24
    %v1181 = vld [vmem:[%s1180] sm:$0xff]
    %1182 = vrot.lane.b32.xlu0 %v1174, 17
    %v1183 = vpop.permute.xlu0 %1182
    %1184 = vrot.lane.b32.xlu0 %v1175, 17
    %v1185 = vpop.permute.xlu0 %1184
    %1186 = vrot.lane.b32.xlu0 %v1176, 17
    %v1187 = vpop.permute.xlu0 %1186
    %1188 = vrot.lane.b32.xlu0 %v1177, 17
    %v1189 = vpop.permute.xlu0 %1188
    %v1190 = vsel %vm60, %v1187, %v1189
    %v1191 = vsel %vm60, %v1185, %v1187
    %v1192 = vsel %vm60, %v1183, %v1185
    %v1193 = vsel %vm60, %v1189, %v1183
    %v1194 = vmul.f32 %v1193, %v70
    %v1195 = vmul.f32 %v1192, %v74
    %v1196 = vmul.f32 %v1191, %v78
    %v1197 = vmul.f32 %v1190, %v82
    %1198 = vrot.lane.b32.xlu0 %v1174, 16
    %v1199 = vpop.permute.xlu0 %1198
    %1200 = vrot.lane.b32.xlu0 %v1175, 16
    %v1201 = vpop.permute.xlu0 %1200
    %1202 = vrot.lane.b32.xlu0 %v1176, 16
    %v1203 = vpop.permute.xlu0 %1202
    %1204 = vrot.lane.b32.xlu0 %v1177, 16
    %v1205 = vpop.permute.xlu0 %1204
    %v1206 = vsel %vm99, %v1203, %v1205
    %v1207 = vsel %vm99, %v1201, %v1203
    %v1208 = vsel %vm99, %v1199, %v1201
    %v1209 = vsel %vm99, %v1205, %v1199
    %v1210 = vmul.f32 %v1209, %v110
    %v1211 = vmul.f32 %v1208, %v114
    %v1212 = vmul.f32 %v1207, %v118
    %v1213 = vmul.f32 %v1206, %v122
    %1214 = vrot.lane.b32.xlu0 %v1174, 15
    %v1215 = vpop.permute.xlu0 %1214
    %1216 = vrot.lane.b32.xlu0 %v1175, 15
    %v1217 = vpop.permute.xlu0 %1216
    %1218 = vrot.lane.b32.xlu0 %v1176, 15
    %v1219 = vpop.permute.xlu0 %1218
    %1220 = vrot.lane.b32.xlu0 %v1177, 15
    %v1221 = vpop.permute.xlu0 %1220
    %v1222 = vsel %vm139, %v1219, %v1221
    %v1223 = vsel %vm139, %v1217, %v1219
    %v1224 = vsel %vm139, %v1215, %v1217
    %v1225 = vsel %vm139, %v1221, %v1215
    %v1226 = vmul.f32 %v1225, %v150
    %v1227 = vmul.f32 %v1224, %v154
    %v1228 = vmul.f32 %v1223, %v158
    %v1229 = vmul.f32 %v1222, %v162
    %1230 = vrot.lane.b32.xlu0 %v1174, 1
    %v1231 = vpop.permute.xlu0 %1230
    %1232 = vrot.lane.b32.xlu0 %v1175, 1
    %v1233 = vpop.permute.xlu0 %1232
    %1234 = vrot.lane.b32.xlu0 %v1176, 1
    %v1235 = vpop.permute.xlu0 %1234
    %1236 = vrot.lane.b32.xlu0 %v1177, 1
    %v1237 = vpop.permute.xlu0 %1236
    %v1238 = vsel %vm179, %v1235, %v1237
    %v1239 = vsel %vm179, %v1233, %v1235
    %v1240 = vsel %vm179, %v1231, %v1233
    %v1241 = vsel %vm179, %v1237, %v1231
    %v1242 = vmul.f32 %v1241, %v190
    %v1243 = vmul.f32 %v1240, %v194
    %v1244 = vmul.f32 %v1239, %v198
    %v1245 = vmul.f32 %v1238, %v202
    %1246 = vrot.lane.b32.xlu0 %v1174, 127
    %v1247 = vpop.permute.xlu0 %1246
    %1248 = vrot.lane.b32.xlu0 %v1175, 127
    %v1249 = vpop.permute.xlu0 %1248
    %1250 = vrot.lane.b32.xlu0 %v1176, 127
    %v1251 = vpop.permute.xlu0 %1250
    %1252 = vrot.lane.b32.xlu0 %v1177, 127
    %v1253 = vpop.permute.xlu0 %1252
    %v1254 = vsel %vm219, %v1251, %v1253
    %v1255 = vsel %vm219, %v1249, %v1251
    %v1256 = vsel %vm219, %v1247, %v1249
    %v1257 = vsel %vm219, %v1253, %v1247
    %v1258 = vmul.f32 %v1256, %v230
    %v1259 = vmul.f32 %v1255, %v234
    %v1260 = vmul.f32 %v1254, %v238
    %v1261 = vmul.f32 %v1257, %v242
    %1262 = vrot.lane.b32.xlu0 %v1174, 113
    %v1263 = vpop.permute.xlu0 %1262
    %1264 = vrot.lane.b32.xlu0 %v1175, 113
    %v1265 = vpop.permute.xlu0 %1264
    %1266 = vrot.lane.b32.xlu0 %v1176, 113
    %v1267 = vpop.permute.xlu0 %1266
    %1268 = vrot.lane.b32.xlu0 %v1177, 113
    %v1269 = vpop.permute.xlu0 %1268
    %v1270 = vsel %vm259, %v1267, %v1269
    %v1271 = vsel %vm259, %v1265, %v1267
    %v1272 = vsel %vm259, %v1263, %v1265
    %v1273 = vsel %vm259, %v1269, %v1263
    %v1274 = vmul.f32 %v1272, %v270
    %v1275 = vmul.f32 %v1271, %v274
    %v1276 = vmul.f32 %v1270, %v278
    %v1277 = vmul.f32 %v1273, %v282
    %1278 = vrot.lane.b32.xlu0 %v1174, 112
    %v1279 = vpop.permute.xlu0 %1278
    %1280 = vrot.lane.b32.xlu0 %v1175, 112
    %v1281 = vpop.permute.xlu0 %1280
    %1282 = vrot.lane.b32.xlu0 %v1176, 112
    %v1283 = vpop.permute.xlu0 %1282
    %1284 = vrot.lane.b32.xlu0 %v1177, 112
    %v1285 = vpop.permute.xlu0 %1284
    %v1286 = vsel %vm299, %v1283, %v1285
    %v1287 = vsel %vm299, %v1281, %v1283
    %v1288 = vsel %vm299, %v1279, %v1281
    %v1289 = vsel %vm299, %v1285, %v1279
    %v1290 = vmul.f32 %v1288, %v310
    %v1291 = vmul.f32 %v1287, %v314
    %v1292 = vmul.f32 %v1286, %v318
    %v1293 = vmul.f32 %v1289, %v322
    %1294 = vrot.lane.b32.xlu0 %v1174, 111
    %v1295 = vpop.permute.xlu0 %1294
    %1296 = vrot.lane.b32.xlu0 %v1175, 111
    %v1297 = vpop.permute.xlu0 %1296
    %1298 = vrot.lane.b32.xlu0 %v1176, 111
    %v1299 = vpop.permute.xlu0 %1298
    %1300 = vrot.lane.b32.xlu0 %v1177, 111
    %v1301 = vpop.permute.xlu0 %1300
    %v1302 = vsel %vm339, %v1299, %v1301
    %v1303 = vsel %vm339, %v1297, %v1299
    %v1304 = vsel %vm339, %v1295, %v1297
    %v1305 = vsel %vm339, %v1301, %v1295
    %v1306 = vmul.f32 %v1304, %v350
    %v1307 = vmul.f32 %v1303, %v354
    %v1308 = vmul.f32 %v1302, %v358
    %v1309 = vmul.f32 %v1305, %v362
    %1311 = vset.pattern.permute.xlu0 0
    %1312 = vperm.xlu0 %1311, %v1181
    %v1313 = vpop.permute.xlu0 %1312
    %v1316 = vsel %vm376, %v1179, 0
    %1318 = vmatprep.subr.mxu0 %v1195
    %1319 = vmatpush1.msra.mxu0 %v1194
    %1320 = vmatprep.subr.mxu0 %v1211
    %1321 = vmatpush1.msra.mxu0 %v1210
    %1322 = vmatprep.subr.mxu0 %v1227
    %1323 = vmatpush1.msra.mxu0 %v1226
    %1324 = vmatprep.subr.mxu0 %v1243
    %1325 = vmatpush1.msra.mxu0 %v1242
    %1326 = vmatprep.subr.mxu0 %v1175
    %1327 = vmatpush1.msra.mxu0 %v1174
    %1328 = vmatprep.subr.mxu0 %v1259
    %1329 = vmatpush1.msra.mxu0 %v1258
    %1330 = vmatprep.subr.mxu0 %v1275
    %1331 = vmatpush1.msra.mxu0 %v1274
    %1332 = vmatprep.subr.mxu0 %v1291
    %1333 = vmatpush1.msra.mxu0 %v1290
    %1334 = vmatprep.subr.mxu0 %v1307
    %1335 = vmatpush1.msra.mxu0 %v1306
    %1336 = vmatprep.subr.mxu0 0.0
    %1337 = vmatpush1.msra.mxu0 0.0
    %1338 = vmatprep.subr.mxu0 0.0
    %1339 = vmatpush1.msra.mxu0 0.0
    %1340 = vmatprep.subr.mxu0 0.0
    %1341 = vmatpush1.msra.mxu0 0.0
    %1342 = vmatprep.subr.mxu0 0.0
    %1343 = vmatpush1.msra.mxu0 0.0
    %1344 = vmatprep.subr.mxu0 0.0
    %1345 = vmatpush1.msra.mxu0 0.0
    %1346 = vmatprep.subr.mxu0 0.0
    %1347 = vmatpush1.msra.mxu0 0.0
    %1348 = vmatprep.subr.mxu0 0.0
    %1349 = vmatpush1.msra.mxu0 0.0
    %1350 = vmatprep.subr.mxu0 0.0
    %1351 = vmatpush1.msra.mxu0 0.0
    %1352 = vmatprep.subr.mxu0 0.0
    %1353 = vmatpush1.msra.mxu0 0.0
    %1354 = vmatprep.subr.mxu0 0.0
    %1355 = vmatpush1.msra.mxu0 0.0
    %1356 = vmatprep.subr.mxu0 0.0
    %1357 = vmatpush1.msra.mxu0 0.0
    %1358 = vmatprep.subr.mxu0 0.0
    %1359 = vmatpush1.msra.mxu0 0.0
    %1360 = vmatprep.subr.mxu0 0.0
    %1361 = vmatpush1.msra.mxu0 0.0
    %1362 = vmatprep.subr.mxu0 0.0
    %1363 = vmatpush1.msra.mxu0 0.0
    %1364 = vmatprep.subr.mxu0 0.0
    %1365 = vmatpush1.msra.mxu0 0.0
    %1366 = vmatprep.subr.mxu0 0.0
    %1367 = vmatpush1.msra.mxu0 0.0
    %1368 = vmatprep.subr.mxu0 0.0
    %1369 = vmatpush1.msra.mxu0 0.0
    %1370 = vmatprep.subr.mxu0 0.0
    %1371 = vmatpush1.msra.mxu0 0.0
    %1372 = vmatprep.subr.mxu0 0.0
    %1373 = vmatpush1.msra.mxu0 0.0
    %1374 = vmatprep.subr.mxu0 0.0
    %1375 = vmatpush1.msra.mxu0 0.0
    %1376 = vmatprep.subr.mxu0 0.0
    %1377 = vmatpush1.msra.mxu0 0.0
    %1378 = vmatprep.subr.mxu0 0.0
    %1379 = vmatpush1.msra.mxu0 0.0
    %1380 = vmatprep.subr.mxu0 0.0
    %1381 = vmatpush1.msra.mxu0 0.0
    %1382 = vmatprep.mubr.f32.mxu0 0.0
    %1383 = vmatmul.mubr.f32.gmra.mrb[0].mxu0 %v1316
    %v1384 = vpop.f32.mrb[0].mxu0
    %v1385 = vadd.f32 %v1313, %v1384
    %v1386 = vpop.f32.mrb[0].mxu0
    %v1387 = vadd.f32 %v1313, %v1386
    %1388 = vdwg.mxu0
    %1389 = vmatprep.subr.mxu0 %v1197
    %1390 = vmatpush1.msra.mxu0 %v1196
    %1391 = vmatprep.subr.mxu0 %v1213
    %1392 = vmatpush1.msra.mxu0 %v1212
    %1393 = vmatprep.subr.mxu0 %v1229
    %1394 = vmatpush1.msra.mxu0 %v1228
    %1395 = vmatprep.subr.mxu0 %v1245
    %1396 = vmatpush1.msra.mxu0 %v1244
    %1397 = vmatprep.subr.mxu0 %v1177
    %1398 = vmatpush1.msra.mxu0 %v1176
    %1399 = vmatprep.subr.mxu0 %v1261
    %1400 = vmatpush1.msra.mxu0 %v1260
    %1401 = vmatprep.subr.mxu0 %v1277
    %1402 = vmatpush1.msra.mxu0 %v1276
    %1403 = vmatprep.subr.mxu0 %v1293
    %1404 = vmatpush1.msra.mxu0 %v1292
    %1405 = vmatprep.subr.mxu0 %v1309
    %1406 = vmatpush1.msra.mxu0 %v1308
    %1407 = vmatprep.subr.mxu0 0.0
    %1408 = vmatpush1.msra.mxu0 0.0
    %1409 = vmatprep.subr.mxu0 0.0
    %1410 = vmatpush1.msra.mxu0 0.0
    %1411 = vmatprep.subr.mxu0 0.0
    %1412 = vmatpush1.msra.mxu0 0.0
    %1413 = vmatprep.subr.mxu0 0.0
    %1414 = vmatpush1.msra.mxu0 0.0
    %1415 = vmatprep.subr.mxu0 0.0
    %1416 = vmatpush1.msra.mxu0 0.0
    %1417 = vmatprep.subr.mxu0 0.0
    %1418 = vmatpush1.msra.mxu0 0.0
    %1419 = vmatprep.subr.mxu0 0.0
    %1420 = vmatpush1.msra.mxu0 0.0
    %1421 = vmatprep.subr.mxu0 0.0
    %1422 = vmatpush1.msra.mxu0 0.0
    %1423 = vmatprep.subr.mxu0 0.0
    %1424 = vmatpush1.msra.mxu0 0.0
    %1425 = vmatprep.subr.mxu0 0.0
    %1426 = vmatpush1.msra.mxu0 0.0
    %1427 = vmatprep.subr.mxu0 0.0
    %1428 = vmatpush1.msra.mxu0 0.0
    %1429 = vmatprep.subr.mxu0 0.0
    %1430 = vmatpush1.msra.mxu0 0.0
    %1431 = vmatprep.subr.mxu0 0.0
    %1432 = vmatpush1.msra.mxu0 0.0
    %1433 = vmatprep.subr.mxu0 0.0
    %1434 = vmatpush1.msra.mxu0 0.0
    %1435 = vmatprep.subr.mxu0 0.0
    %1436 = vmatpush1.msra.mxu0 0.0
    %1437 = vmatprep.subr.mxu0 0.0
    %1438 = vmatpush1.msra.mxu0 0.0
    %1439 = vmatprep.subr.mxu0 0.0
    %1440 = vmatpush1.msra.mxu0 0.0
    %1441 = vmatprep.subr.mxu0 0.0
    %1442 = vmatpush1.msra.mxu0 0.0
    %1443 = vmatprep.subr.mxu0 0.0
    %1444 = vmatpush1.msra.mxu0 0.0
    %1445 = vmatprep.subr.mxu0 0.0
    %1446 = vmatpush1.msra.mxu0 0.0
    %1447 = vmatprep.subr.mxu0 0.0
    %1448 = vmatpush1.msra.mxu0 0.0
    %1449 = vmatprep.subr.mxu0 0.0
    %1450 = vmatpush1.msra.mxu0 0.0
    %1451 = vmatprep.subr.mxu0 0.0
    %1452 = vmatpush1.msra.mxu0 0.0
    %1453 = vmatprep.mubr.f32.mxu0 0.0
    %1454 = vmatmul.mubr.f32.gmra.mrb[0].mxu0 %v1316
    %v1455 = vpop.f32.mrb[0].mxu0
    %v1456 = vadd.f32 %v1313, %v1455
    %v1457 = vpop.f32.mrb[0].mxu0
    %v1458 = vadd.f32 %v1313, %v1457
    %1459 = vdwg.mxu0
    %v1460 = vadd.f32 %v1385, %v864
    %v1461 = vadd.f32 %v1387, %v865
    %v1462 = vadd.f32 %v1456, %v866
    %v1463 = vadd.f32 %v1458, %v867
    %1464 = vst [vmem:[#allocation7] sm:$0xff] %v1460
    %1465 = vst [vmem:[#allocation7 + $0x8] sm:$0xff] %v1461
    %1466 = vst [vmem:[#allocation7 + $0x10] sm:$0xff] %v1462
    %1467 = vst [vmem:[#allocation7 + $0x18] sm:$0xff] %v1463
    // Predicated region
    $region26: #{tpu_custom_call.1} parent=1 // pred_check
      _
    $region27: #{tpu_custom_call.1} parent=1 // pred_check_branch
      %1469 = sbr.rel (0) target = $region29
    $region28: #{tpu_custom_call.1} parent=1 // pred_region
      %s1471 = ssub.s32 512, 512
      %1472 = vsyncadd [#allocation4], %s1471
      %s1474 = sshll.u32 [#allocation7], 4
      %s1475 = int_to_ptr.vmem [resolvable:$true] %s1474
      %1477 = dma.vmem_to_hbm [thread:$0]  %s1475, 512, %s4, [#allocation4]
    $region29: #{tpu_custom_call.1} parent=1 // pred_fallthru
      _
    // Predicated region
    $region30: #{tpu_custom_call.1} parent=1 // pred_check
      _
    $region31: #{tpu_custom_call.1} parent=1 // pred_check_branch
      %1479 = sbr.rel (0) target = $region33
    $region32: #{tpu_custom_call.1} parent=1 // pred_region
      %1480 = dma.done [#allocation4], 512
    $region33: #{tpu_custom_call.1} parent=1 // pred_fallthru
      _
    %1481 = vsyncpa [#allocation3], 1
    %1482 = vsyncpa [#allocation6], 1
    %1483 = vsyncpa [#allocation4], 1

</llo_original>
